<compile_context>
chip_gen: v7x
topology: tpu7x:2x2x1
jax: 0.10.0
libtpu: 0.0.40
codegen_flags: <defaults>
</compile_context>

<pallas_src>
import jax
import jax.numpy as jnp
from jax.experimental import pallas as pl
from jax.experimental.pallas import tpu as pltpu


# ----------------------------- Pallas kernel -------------------------------

def _gatv2a_fused_kernel(x_ref, adj_ref, onehot_ref,
                         w1_ref, b1_ref, att1_ref, bias1_ref,
                         w2_ref, b2_ref, att2_ref, bias2_ref,
                         w3_ref, b3_ref, att3_ref, bias3_ref,
                         out_ref, *, negative_slope: float = 0.2):
    adj = adj_ref[...]                                  # [N_t, N_s], read once
    neg_inf = jnp.float32(-1e30)

    def gatv2_layer(h, w, b, att, bias, apply_relu):
        C = att.shape[-1]
        # One fused matmul for both linear maps: z = [zl | zr]   (MXU)
        z = jnp.dot(h, w, preferred_element_type=jnp.float32) + b   # [N, 2C]
        zl = z[:, :C]                                   # source-side (Theta_l)
        zr = z[:, C:]                                   # target-side (Theta_r)
        # Pairwise pre-activation s[i, j, c] = zl[j, c] + zr[i, c]   (VPU)
        s = zl[None, :, :] + zr[:, None, :]             # [N_t, N_s, C]
        s = jnp.where(s > 0, s, negative_slope * s)     # LeakyReLU
        e = jnp.sum(s * att[None, :, :], axis=-1)       # [N_t, N_s]
        # Masked softmax over sources j (single masking pass; masked entries
        # underflow to exactly 0 after exp).
        e = jnp.where(adj > 0, e, neg_inf)
        m = jnp.max(e, axis=1, keepdims=True)
        p = jnp.exp(e - m)
        denom = jnp.maximum(jnp.sum(p, axis=1, keepdims=True), 1e-30)
        # Aggregate first, normalize after (EUP reciprocal is ~free).
        agg = jnp.dot(p, zl, preferred_element_type=jnp.float32)    # [N_t, C]
        out = agg * pl.reciprocal(denom, approx=True) + bias
        if apply_relu:
            out = jnp.maximum(out, 0.0)
        return out

    h = x_ref[...]
    h = gatv2_layer(h, w1_ref[...], b1_ref[...], att1_ref[...], bias1_ref[...],
                    apply_relu=True)                    # relu(conv1(x))
    h = gatv2_layer(h, w2_ref[...], b2_ref[...], att2_ref[...], bias2_ref[...],
                    apply_relu=True)                    # relu(conv2(h))
    h = gatv2_layer(h, w3_ref[...], b3_ref[...], att3_ref[...], bias3_ref[...],
                    apply_relu=False)                   # conv3(h)
    # global_add_pool: out[g] = sum_{i: batch[i]==g} h[i]  ==  onehot @ h
    out_ref[...] = jnp.dot(onehot_ref[...], h, preferred_element_type=jnp.float32)


# ------------------------------ JAX wrapper ---------------------------------

def gatv2a_forward(x, adj, onehot, p1, p2, p3):
    # TODO(synk): torch.nn.Dropout layers are identity in eval mode; omitted.
    G = onehot.shape[0]
    C_out = p3["att"].shape[-1]

    args = [x, adj, onehot]
    for p in (p1, p2, p3):
        args += [p["w"], p["b"], p["att"], p["bias"]]

    in_specs = [pl.BlockSpec(a.shape, lambda i: (0, 0)) for a in args]

    return pl.pallas_call(
        _gatv2a_fused_kernel,
        out_shape=jax.ShapeDtypeStruct((G, C_out), jnp.float32),
        grid=(1,),
        in_specs=in_specs,
        out_specs=pl.BlockSpec((G, C_out), lambda i: (0, 0)),
        compiler_params=pltpu.CompilerParams(
            dimension_semantics=("arbitrary",)),
    )(*args)


# --------------------------- deterministic params ---------------------------

def _glorot(key, shape):
    fan_in, fan_out = shape[0], shape[-1]
    limit = (6.0 / (fan_in + fan_out)) ** 0.5
    return jax.random.uniform(key, shape, jnp.float32, -limit, limit)


def init_gatv2_params(key, fin, c):
    ks = jax.random.split(key, 3)
    wl = _glorot(ks[0], (fin, c))
    wr = _glorot(ks[1], (fin, c))
    return {
        "w": jnp.concatenate([wl, wr], axis=1),          # [fin, 2c]  (Wl | Wr)
        "b": jnp.zeros((1, 2 * c), jnp.float32),         # (bl | br)
        "att": _glorot(ks[2], (1, c)),
        "bias": jnp.zeros((1, c), jnp.float32),
    }


# ---------------------------------- main -------------------------------------

if __name__ == "__main__":
    key = jax.random.PRNGKey(0)
    k_x, k_p1, k_p2, k_p3 = jax.random.split(key, 4)

    N = 16           # nodes (two graphs of 8 nodes)
    F_IN = 8         # in_channels
    HIDDEN = 32      # hidden_channels
    F_OUT = 8        # out_channels
    G = 2            # number of graphs

    x = jax.random.normal(k_x, (N, F_IN), jnp.float32)

    # Build edge_index: a bidirectional ring inside each graph of 8 nodes.
    src, dst = [], []
    for g in range(G):
        base = g * 8
        for u in range(8):
            v = (u + 1) % 8
            src += [base + u, base + v]
            dst += [base + v, base + u]
    src = jnp.array(src, jnp.int32)
    dst = jnp.array(dst, jnp.int32)

    # Dense adjacency mask adj[target, source] = 1, plus self-loops.
    adj = jnp.zeros((N, N), jnp.float32).at[dst, src].set(1.0)
    adj = jnp.clip(adj + jnp.eye(N, dtype=jnp.float32), 0.0, 1.0)

    # batch vector -> one-hot pooling matrix [G, N]
    batch = jnp.array([0] * 8 + [1] * 8, jnp.int32)
    onehot = (batch[None, :] == jnp.arange(G)[:, None]).astype(jnp.float32)

    p1 = init_gatv2_params(k_p1, F_IN, HIDDEN)
    p2 = init_gatv2_params(k_p2, HIDDEN, HIDDEN)
    p3 = init_gatv2_params(k_p3, HIDDEN, F_OUT)

    out = gatv2a_forward(x, adj, onehot, p1, p2, p3)
    out = jax.block_until_ready(out)
    assert out.shape == (G, F_OUT)
    assert bool(jnp.all(jnp.isfinite(out)))
    print("KERNEL_OK")
</pallas_src>

<mosaic_0001>
module attributes {stable_mosaic.version = 11 : i64} {
  func.func @_gatv2a_fused_kernel(%arg0: i32, %arg1: memref<16x8xf32, #tpu.memory_space<vmem>>, %arg2: memref<16x16xf32, #tpu.memory_space<vmem>>, %arg3: memref<2x16xf32, #tpu.memory_space<vmem>>, %arg4: memref<8x64xf32, #tpu.memory_space<vmem>>, %arg5: memref<1x64xf32, #tpu.memory_space<vmem>>, %arg6: memref<1x32xf32, #tpu.memory_space<vmem>>, %arg7: memref<1x32xf32, #tpu.memory_space<vmem>>, %arg8: memref<32x64xf32, #tpu.memory_space<vmem>>, %arg9: memref<1x64xf32, #tpu.memory_space<vmem>>, %arg10: memref<1x32xf32, #tpu.memory_space<vmem>>, %arg11: memref<1x32xf32, #tpu.memory_space<vmem>>, %arg12: memref<32x16xf32, #tpu.memory_space<vmem>>, %arg13: memref<1x16xf32, #tpu.memory_space<vmem>>, %arg14: memref<1x8xf32, #tpu.memory_space<vmem>>, %arg15: memref<1x8xf32, #tpu.memory_space<vmem>>, %arg16: memref<2x8xf32, #tpu.memory_space<vmem>>) attributes {dimension_semantics = [#tpu.dimension_semantics<arbitrary>], iteration_bounds = array<i64: 1>, scalar_prefetch = 0 : i64, scratch_operands = 0 : i64, tpu.core_type = #tpu.core_type<tc>, window_params = [{pipeline_mode = #tpu.pipeline_mode<synchronous>, transform_indices = @transform_0, window_bounds = array<i64: 16, 8>}, {pipeline_mode = #tpu.pipeline_mode<synchronous>, transform_indices = @transform_1, window_bounds = array<i64: 16, 16>}, {pipeline_mode = #tpu.pipeline_mode<synchronous>, transform_indices = @transform_2, window_bounds = array<i64: 2, 16>}, {pipeline_mode = #tpu.pipeline_mode<synchronous>, transform_indices = @transform_3, window_bounds = array<i64: 8, 64>}, {pipeline_mode = #tpu.pipeline_mode<synchronous>, transform_indices = @transform_4, window_bounds = array<i64: 1, 64>}, {pipeline_mode = #tpu.pipeline_mode<synchronous>, transform_indices = @transform_5, window_bounds = array<i64: 1, 32>}, {pipeline_mode = #tpu.pipeline_mode<synchronous>, transform_indices = @transform_6, window_bounds = array<i64: 1, 32>}, {pipeline_mode = #tpu.pipeline_mode<synchronous>, transform_indices = @transform_7, window_bounds = array<i64: 32, 64>}, {pipeline_mode = #tpu.pipeline_mode<synchronous>, transform_indices = @transform_8, window_bounds = array<i64: 1, 64>}, {pipeline_mode = #tpu.pipeline_mode<synchronous>, transform_indices = @transform_9, window_bounds = array<i64: 1, 32>}, {pipeline_mode = #tpu.pipeline_mode<synchronous>, transform_indices = @transform_10, window_bounds = array<i64: 1, 32>}, {pipeline_mode = #tpu.pipeline_mode<synchronous>, transform_indices = @transform_11, window_bounds = array<i64: 32, 16>}, {pipeline_mode = #tpu.pipeline_mode<synchronous>, transform_indices = @transform_12, window_bounds = array<i64: 1, 16>}, {pipeline_mode = #tpu.pipeline_mode<synchronous>, transform_indices = @transform_13, window_bounds = array<i64: 1, 8>}, {pipeline_mode = #tpu.pipeline_mode<synchronous>, transform_indices = @transform_14, window_bounds = array<i64: 1, 8>}, {pipeline_mode = #tpu.pipeline_mode<synchronous>, transform_indices = @transform_15, window_bounds = array<i64: 2, 8>}]} {
    %c0 = arith.constant 0 : index
    %c0_0 = arith.constant 0 : index
    %0 = vector.load %arg2[%c0, %c0_0] : memref<16x16xf32, #tpu.memory_space<vmem>>, vector<16x16xf32>
    %c0_1 = arith.constant 0 : index
    %c0_2 = arith.constant 0 : index
    %1 = vector.load %arg1[%c0_1, %c0_2] : memref<16x8xf32, #tpu.memory_space<vmem>>, vector<16x8xf32>
    %c0_3 = arith.constant 0 : index
    %c0_4 = arith.constant 0 : index
    %2 = vector.load %arg4[%c0_3, %c0_4] : memref<8x64xf32, #tpu.memory_space<vmem>>, vector<8x64xf32>
    %c0_5 = arith.constant 0 : index
    %c0_6 = arith.constant 0 : index
    %3 = vector.load %arg5[%c0_5, %c0_6] : memref<1x64xf32, #tpu.memory_space<vmem>>, vector<1x64xf32>
    %c0_7 = arith.constant 0 : index
    %c0_8 = arith.constant 0 : index
    %4 = vector.load %arg6[%c0_7, %c0_8] : memref<1x32xf32, #tpu.memory_space<vmem>>, vector<1x32xf32>
    %c0_9 = arith.constant 0 : index
    %c0_10 = arith.constant 0 : index
    %5 = vector.load %arg7[%c0_9, %c0_10] : memref<1x32xf32, #tpu.memory_space<vmem>>, vector<1x32xf32>
    %cst = arith.constant dense<0.000000e+00> : vector<16x64xf32>
    %6 = tpu.matmul %1, %2, %cst {dimension_numbers = #tpu.dot_dimension_numbers<[1], [0], [0], [1], [0, 0, 1, 1], [], []>} : vector<16x8xf32>, vector<8x64xf32>, vector<16x64xf32> -> vector<16x64xf32>
    %7 = vector.broadcast %3 : vector<1x64xf32> to vector<16x64xf32>
    %8 = arith.addf %6, %7 : vector<16x64xf32>
    %9 = vector.extract_strided_slice %8 {offsets = [0, 0], sizes = [16, 32], strides = [1, 1]} : vector<16x64xf32> to vector<16x32xf32>
    %10 = vector.extract_strided_slice %8 {offsets = [0, 32], sizes = [16, 32], strides = [1, 1]} : vector<16x64xf32> to vector<16x32xf32>
    %11 = vector.shape_cast %9 : vector<16x32xf32> to vector<1x16x32xf32>
    %12 = vector.shape_cast %10 : vector<16x32xf32> to vector<16x1x32xf32>
    %13 = vector.broadcast %11 : vector<1x16x32xf32> to vector<16x16x32xf32>
    %14 = vector.broadcast %12 : vector<16x1x32xf32> to vector<16x16x32xf32>
    %15 = arith.addf %13, %14 : vector<16x16x32xf32>
    %cst_11 = arith.constant 0.000000e+00 : f32
    %16 = vector.broadcast %cst_11 : f32 to vector<16x16x32xf32>
    %17 = arith.cmpf ogt, %15, %16 : vector<16x16x32xf32>
    %cst_12 = arith.constant 2.000000e-01 : f32
    %18 = vector.broadcast %cst_12 : f32 to vector<16x16x32xf32>
    %19 = arith.mulf %18, %15 : vector<16x16x32xf32>
    %20 = arith.select %17, %15, %19 : vector<16x16x32xi1>, vector<16x16x32xf32>
    %21 = vector.shape_cast %4 : vector<1x32xf32> to vector<1x1x32xf32>
    %22 = vector.broadcast %21 : vector<1x1x32xf32> to vector<16x16x32xf32>
    %23 = arith.mulf %20, %22 : vector<16x16x32xf32>
    %cst_13 = arith.constant dense<0.000000e+00> : vector<16x16xf32>
    %24 = vector.multi_reduction <add>, %23, %cst_13 [2] : vector<16x16x32xf32> to vector<16x16xf32>
    %cst_14 = arith.constant 0.000000e+00 : f32
    %25 = vector.broadcast %cst_14 : f32 to vector<16x16xf32>
    %26 = arith.cmpf ogt, %0, %25 : vector<16x16xf32>
    %cst_15 = arith.constant -1.000000e+30 : f32
    %27 = vector.broadcast %cst_15 : f32 to vector<16x16xf32>
    %28 = arith.select %26, %24, %27 : vector<16x16xi1>, vector<16x16xf32>
    %cst_16 = arith.constant dense<0xFF800000> : vector<16xf32>
    %29 = vector.multi_reduction <maximumf>, %28, %cst_16 [1] : vector<16x16xf32> to vector<16xf32>
    %30 = vector.shape_cast %29 : vector<16xf32> to vector<16x1xf32>
    %31 = vector.broadcast %30 : vector<16x1xf32> to vector<16x16xf32>
    %32 = arith.subf %28, %31 : vector<16x16xf32>
    %33 = math.exp %32 : vector<16x16xf32>
    %cst_17 = arith.constant dense<0.000000e+00> : vector<16xf32>
    %34 = vector.multi_reduction <add>, %33, %cst_17 [1] : vector<16x16xf32> to vector<16xf32>
    %35 = vector.shape_cast %34 : vector<16xf32> to vector<16x1xf32>
    %cst_18 = arith.constant 1.000000e-30 : f32
    %36 = vector.broadcast %cst_18 : f32 to vector<16x1xf32>
    %37 = arith.maximumf %35, %36 : vector<16x1xf32>
    %cst_19 = arith.constant dense<0.000000e+00> : vector<16x32xf32>
    %38 = tpu.matmul %33, %9, %cst_19 {dimension_numbers = #tpu.dot_dimension_numbers<[1], [0], [0], [1], [0, 0, 1, 1], [], []>} : vector<16x16xf32>, vector<16x32xf32>, vector<16x32xf32> -> vector<16x32xf32>
    %39 = tpu.reciprocal %37 {approx = true} : vector<16x1xf32> -> vector<16x1xf32>
    %40 = vector.broadcast %39 : vector<16x1xf32> to vector<16x32xf32>
    %41 = arith.mulf %38, %40 : vector<16x32xf32>
    %42 = vector.broadcast %5 : vector<1x32xf32> to vector<16x32xf32>
    %43 = arith.addf %41, %42 : vector<16x32xf32>
    %cst_20 = arith.constant 0.000000e+00 : f32
    %44 = vector.broadcast %cst_20 : f32 to vector<16x32xf32>
    %45 = arith.maximumf %43, %44 : vector<16x32xf32>
    %c0_21 = arith.constant 0 : index
    %c0_22 = arith.constant 0 : index
    %46 = vector.load %arg8[%c0_21, %c0_22] : memref<32x64xf32, #tpu.memory_space<vmem>>, vector<32x64xf32>
    %c0_23 = arith.constant 0 : index
    %c0_24 = arith.constant 0 : index
    %47 = vector.load %arg9[%c0_23, %c0_24] : memref<1x64xf32, #tpu.memory_space<vmem>>, vector<1x64xf32>
    %c0_25 = arith.constant 0 : index
    %c0_26 = arith.constant 0 : index
    %48 = vector.load %arg10[%c0_25, %c0_26] : memref<1x32xf32, #tpu.memory_space<vmem>>, vector<1x32xf32>
    %c0_27 = arith.constant 0 : index
    %c0_28 = arith.constant 0 : index
    %49 = vector.load %arg11[%c0_27, %c0_28] : memref<1x32xf32, #tpu.memory_space<vmem>>, vector<1x32xf32>
    %cst_29 = arith.constant dense<0.000000e+00> : vector<16x64xf32>
    %50 = tpu.matmul %45, %46, %cst_29 {dimension_numbers = #tpu.dot_dimension_numbers<[1], [0], [0], [1], [0, 0, 1, 1], [], []>} : vector<16x32xf32>, vector<32x64xf32>, vector<16x64xf32> -> vector<16x64xf32>
    %51 = vector.broadcast %47 : vector<1x64xf32> to vector<16x64xf32>
    %52 = arith.addf %50, %51 : vector<16x64xf32>
    %53 = vector.extract_strided_slice %52 {offsets = [0, 0], sizes = [16, 32], strides = [1, 1]} : vector<16x64xf32> to vector<16x32xf32>
    %54 = vector.extract_strided_slice %52 {offsets = [0, 32], sizes = [16, 32], strides = [1, 1]} : vector<16x64xf32> to vector<16x32xf32>
    %55 = vector.shape_cast %53 : vector<16x32xf32> to vector<1x16x32xf32>
    %56 = vector.shape_cast %54 : vector<16x32xf32> to vector<16x1x32xf32>
    %57 = vector.broadcast %55 : vector<1x16x32xf32> to vector<16x16x32xf32>
    %58 = vector.broadcast %56 : vector<16x1x32xf32> to vector<16x16x32xf32>
    %59 = arith.addf %57, %58 : vector<16x16x32xf32>
    %cst_30 = arith.constant 0.000000e+00 : f32
    %60 = vector.broadcast %cst_30 : f32 to vector<16x16x32xf32>
    %61 = arith.cmpf ogt, %59, %60 : vector<16x16x32xf32>
    %cst_31 = arith.constant 2.000000e-01 : f32
    %62 = vector.broadcast %cst_31 : f32 to vector<16x16x32xf32>
    %63 = arith.mulf %62, %59 : vector<16x16x32xf32>
    %64 = arith.select %61, %59, %63 : vector<16x16x32xi1>, vector<16x16x32xf32>
    %65 = vector.shape_cast %48 : vector<1x32xf32> to vector<1x1x32xf32>
    %66 = vector.broadcast %65 : vector<1x1x32xf32> to vector<16x16x32xf32>
    %67 = arith.mulf %64, %66 : vector<16x16x32xf32>
    %cst_32 = arith.constant dense<0.000000e+00> : vector<16x16xf32>
    %68 = vector.multi_reduction <add>, %67, %cst_32 [2] : vector<16x16x32xf32> to vector<16x16xf32>
    %cst_33 = arith.constant 0.000000e+00 : f32
    %69 = vector.broadcast %cst_33 : f32 to vector<16x16xf32>
    %70 = arith.cmpf ogt, %0, %69 : vector<16x16xf32>
    %cst_34 = arith.constant -1.000000e+30 : f32
    %71 = vector.broadcast %cst_34 : f32 to vector<16x16xf32>
    %72 = arith.select %70, %68, %71 : vector<16x16xi1>, vector<16x16xf32>
    %cst_35 = arith.constant dense<0xFF800000> : vector<16xf32>
    %73 = vector.multi_reduction <maximumf>, %72, %cst_35 [1] : vector<16x16xf32> to vector<16xf32>
    %74 = vector.shape_cast %73 : vector<16xf32> to vector<16x1xf32>
    %75 = vector.broadcast %74 : vector<16x1xf32> to vector<16x16xf32>
    %76 = arith.subf %72, %75 : vector<16x16xf32>
    %77 = math.exp %76 : vector<16x16xf32>
    %cst_36 = arith.constant dense<0.000000e+00> : vector<16xf32>
    %78 = vector.multi_reduction <add>, %77, %cst_36 [1] : vector<16x16xf32> to vector<16xf32>
    %79 = vector.shape_cast %78 : vector<16xf32> to vector<16x1xf32>
    %cst_37 = arith.constant 1.000000e-30 : f32
    %80 = vector.broadcast %cst_37 : f32 to vector<16x1xf32>
    %81 = arith.maximumf %79, %80 : vector<16x1xf32>
    %cst_38 = arith.constant dense<0.000000e+00> : vector<16x32xf32>
    %82 = tpu.matmul %77, %53, %cst_38 {dimension_numbers = #tpu.dot_dimension_numbers<[1], [0], [0], [1], [0, 0, 1, 1], [], []>} : vector<16x16xf32>, vector<16x32xf32>, vector<16x32xf32> -> vector<16x32xf32>
    %83 = tpu.reciprocal %81 {approx = true} : vector<16x1xf32> -> vector<16x1xf32>
    %84 = vector.broadcast %83 : vector<16x1xf32> to vector<16x32xf32>
    %85 = arith.mulf %82, %84 : vector<16x32xf32>
    %86 = vector.broadcast %49 : vector<1x32xf32> to vector<16x32xf32>
    %87 = arith.addf %85, %86 : vector<16x32xf32>
    %cst_39 = arith.constant 0.000000e+00 : f32
    %88 = vector.broadcast %cst_39 : f32 to vector<16x32xf32>
    %89 = arith.maximumf %87, %88 : vector<16x32xf32>
    %c0_40 = arith.constant 0 : index
    %c0_41 = arith.constant 0 : index
    %90 = vector.load %arg12[%c0_40, %c0_41] : memref<32x16xf32, #tpu.memory_space<vmem>>, vector<32x16xf32>
    %c0_42 = arith.constant 0 : index
    %c0_43 = arith.constant 0 : index
    %91 = vector.load %arg13[%c0_42, %c0_43] : memref<1x16xf32, #tpu.memory_space<vmem>>, vector<1x16xf32>
    %c0_44 = arith.constant 0 : index
    %c0_45 = arith.constant 0 : index
    %92 = vector.load %arg14[%c0_44, %c0_45] : memref<1x8xf32, #tpu.memory_space<vmem>>, vector<1x8xf32>
    %c0_46 = arith.constant 0 : index
    %c0_47 = arith.constant 0 : index
    %93 = vector.load %arg15[%c0_46, %c0_47] : memref<1x8xf32, #tpu.memory_space<vmem>>, vector<1x8xf32>
    %cst_48 = arith.constant dense<0.000000e+00> : vector<16x16xf32>
    %94 = tpu.matmul %89, %90, %cst_48 {dimension_numbers = #tpu.dot_dimension_numbers<[1], [0], [0], [1], [0, 0, 1, 1], [], []>} : vector<16x32xf32>, vector<32x16xf32>, vector<16x16xf32> -> vector<16x16xf32>
    %95 = vector.broadcast %91 : vector<1x16xf32> to vector<16x16xf32>
    %96 = arith.addf %94, %95 : vector<16x16xf32>
    %97 = vector.extract_strided_slice %96 {offsets = [0, 0], sizes = [16, 8], strides = [1, 1]} : vector<16x16xf32> to vector<16x8xf32>
    %98 = vector.extract_strided_slice %96 {offsets = [0, 8], sizes = [16, 8], strides = [1, 1]} : vector<16x16xf32> to vector<16x8xf32>
    %99 = vector.shape_cast %97 : vector<16x8xf32> to vector<1x16x8xf32>
    %100 = vector.shape_cast %98 : vector<16x8xf32> to vector<16x1x8xf32>
    %101 = vector.broadcast %99 : vector<1x16x8xf32> to vector<16x16x8xf32>
    %102 = vector.broadcast %100 : vector<16x1x8xf32> to vector<16x16x8xf32>
    %103 = arith.addf %101, %102 : vector<16x16x8xf32>
    %cst_49 = arith.constant 0.000000e+00 : f32
    %104 = vector.broadcast %cst_49 : f32 to vector<16x16x8xf32>
    %105 = arith.cmpf ogt, %103, %104 : vector<16x16x8xf32>
    %cst_50 = arith.constant 2.000000e-01 : f32
    %106 = vector.broadcast %cst_50 : f32 to vector<16x16x8xf32>
    %107 = arith.mulf %106, %103 : vector<16x16x8xf32>
    %108 = arith.select %105, %103, %107 : vector<16x16x8xi1>, vector<16x16x8xf32>
    %109 = vector.shape_cast %92 : vector<1x8xf32> to vector<1x1x8xf32>
    %110 = vector.broadcast %109 : vector<1x1x8xf32> to vector<16x16x8xf32>
    %111 = arith.mulf %108, %110 : vector<16x16x8xf32>
    %cst_51 = arith.constant dense<0.000000e+00> : vector<16x16xf32>
    %112 = vector.multi_reduction <add>, %111, %cst_51 [2] : vector<16x16x8xf32> to vector<16x16xf32>
    %cst_52 = arith.constant 0.000000e+00 : f32
    %113 = vector.broadcast %cst_52 : f32 to vector<16x16xf32>
    %114 = arith.cmpf ogt, %0, %113 : vector<16x16xf32>
    %cst_53 = arith.constant -1.000000e+30 : f32
    %115 = vector.broadcast %cst_53 : f32 to vector<16x16xf32>
    %116 = arith.select %114, %112, %115 : vector<16x16xi1>, vector<16x16xf32>
    %cst_54 = arith.constant dense<0xFF800000> : vector<16xf32>
    %117 = vector.multi_reduction <maximumf>, %116, %cst_54 [1] : vector<16x16xf32> to vector<16xf32>
    %118 = vector.shape_cast %117 : vector<16xf32> to vector<16x1xf32>
    %119 = vector.broadcast %118 : vector<16x1xf32> to vector<16x16xf32>
    %120 = arith.subf %116, %119 : vector<16x16xf32>
    %121 = math.exp %120 : vector<16x16xf32>
    %cst_55 = arith.constant dense<0.000000e+00> : vector<16xf32>
    %122 = vector.multi_reduction <add>, %121, %cst_55 [1] : vector<16x16xf32> to vector<16xf32>
    %123 = vector.shape_cast %122 : vector<16xf32> to vector<16x1xf32>
    %cst_56 = arith.constant 1.000000e-30 : f32
    %124 = vector.broadcast %cst_56 : f32 to vector<16x1xf32>
    %125 = arith.maximumf %123, %124 : vector<16x1xf32>
    %cst_57 = arith.constant dense<0.000000e+00> : vector<16x8xf32>
    %126 = tpu.matmul %121, %97, %cst_57 {dimension_numbers = #tpu.dot_dimension_numbers<[1], [0], [0], [1], [0, 0, 1, 1], [], []>} : vector<16x16xf32>, vector<16x8xf32>, vector<16x8xf32> -> vector<16x8xf32>
    %127 = tpu.reciprocal %125 {approx = true} : vector<16x1xf32> -> vector<16x1xf32>
    %128 = vector.broadcast %127 : vector<16x1xf32> to vector<16x8xf32>
    %129 = arith.mulf %126, %128 : vector<16x8xf32>
    %130 = vector.broadcast %93 : vector<1x8xf32> to vector<16x8xf32>
    %131 = arith.addf %129, %130 : vector<16x8xf32>
    %c0_58 = arith.constant 0 : index
    %c0_59 = arith.constant 0 : index
    %132 = vector.load %arg3[%c0_58, %c0_59] : memref<2x16xf32, #tpu.memory_space<vmem>>, vector<2x16xf32>
    %cst_60 = arith.constant dense<0.000000e+00> : vector<2x8xf32>
    %133 = tpu.matmul %132, %131, %cst_60 {dimension_numbers = #tpu.dot_dimension_numbers<[1], [0], [0], [1], [0, 0, 1, 1], [], []>} : vector<2x16xf32>, vector<16x8xf32>, vector<2x8xf32> -> vector<2x8xf32>
    %c0_61 = arith.constant 0 : index
    %c0_62 = arith.constant 0 : index
    %134 = vector.load %arg16[%c0_61, %c0_62] : memref<2x8xf32, #tpu.memory_space<vmem>>, vector<2x8xf32>
    tpu.vector_store %arg16[%c0_61, %c0_62], %133 {strides = array<i32>} : memref<2x8xf32, #tpu.memory_space<vmem>>, vector<2x8xf32>,
    return
  }
  func.func @transform_0(%arg0: i32) -> (i32, i32) {
    %c0_i32 = arith.constant 0 : i32
    %c0_i32_0 = arith.constant 0 : i32
    %c0_i32_1 = arith.constant 0 : i32
    return %c0_i32, %c0_i32_0 : i32, i32
  }
  func.func @transform_1(%arg0: i32) -> (i32, i32) {
    %c0_i32 = arith.constant 0 : i32
    %c0_i32_0 = arith.constant 0 : i32
    %c0_i32_1 = arith.constant 0 : i32
    return %c0_i32, %c0_i32_0 : i32, i32
  }
  func.func @transform_2(%arg0: i32) -> (i32, i32) {
    %c0_i32 = arith.constant 0 : i32
    %c0_i32_0 = arith.constant 0 : i32
    %c0_i32_1 = arith.constant 0 : i32
    return %c0_i32, %c0_i32_0 : i32, i32
  }
  func.func @transform_3(%arg0: i32) -> (i32, i32) {
    %c0_i32 = arith.constant 0 : i32
    %c0_i32_0 = arith.constant 0 : i32
    %c0_i32_1 = arith.constant 0 : i32
    return %c0_i32, %c0_i32_0 : i32, i32
  }
  func.func @transform_4(%arg0: i32) -> (i32, i32) {
    %c0_i32 = arith.constant 0 : i32
    %c0_i32_0 = arith.constant 0 : i32
    %c0_i32_1 = arith.constant 0 : i32
    return %c0_i32, %c0_i32_0 : i32, i32
  }
  func.func @transform_5(%arg0: i32) -> (i32, i32) {
    %c0_i32 = arith.constant 0 : i32
    %c0_i32_0 = arith.constant 0 : i32
    %c0_i32_1 = arith.constant 0 : i32
    return %c0_i32, %c0_i32_0 : i32, i32
  }
  func.func @transform_6(%arg0: i32) -> (i32, i32) {
    %c0_i32 = arith.constant 0 : i32
    %c0_i32_0 = arith.constant 0 : i32
    %c0_i32_1 = arith.constant 0 : i32
    return %c0_i32, %c0_i32_0 : i32, i32
  }
  func.func @transform_7(%arg0: i32) -> (i32, i32) {
    %c0_i32 = arith.constant 0 : i32
    %c0_i32_0 = arith.constant 0 : i32
    %c0_i32_1 = arith.constant 0 : i32
    return %c0_i32, %c0_i32_0 : i32, i32
  }
  func.func @transform_8(%arg0: i32) -> (i32, i32) {
    %c0_i32 = arith.constant 0 : i32
    %c0_i32_0 = arith.constant 0 : i32
    %c0_i32_1 = arith.constant 0 : i32
    return %c0_i32, %c0_i32_0 : i32, i32
  }
  func.func @transform_9(%arg0: i32) -> (i32, i32) {
    %c0_i32 = arith.constant 0 : i32
    %c0_i32_0 = arith.constant 0 : i32
    %c0_i32_1 = arith.constant 0 : i32
    return %c0_i32, %c0_i32_0 : i32, i32
  }
  func.func @transform_10(%arg0: i32) -> (i32, i32) {
    %c0_i32 = arith.constant 0 : i32
    %c0_i32_0 = arith.constant 0 : i32
    %c0_i32_1 = arith.constant 0 : i32
    return %c0_i32, %c0_i32_0 : i32, i32
  }
  func.func @transform_11(%arg0: i32) -> (i32, i32) {
    %c0_i32 = arith.constant 0 : i32
    %c0_i32_0 = arith.constant 0 : i32
    %c0_i32_1 = arith.constant 0 : i32
    return %c0_i32, %c0_i32_0 : i32, i32
  }
  func.func @transform_12(%arg0: i32) -> (i32, i32) {
    %c0_i32 = arith.constant 0 : i32
    %c0_i32_0 = arith.constant 0 : i32
    %c0_i32_1 = arith.constant 0 : i32
    return %c0_i32, %c0_i32_0 : i32, i32
  }
  func.func @transform_13(%arg0: i32) -> (i32, i32) {
    %c0_i32 = arith.constant 0 : i32
    %c0_i32_0 = arith.constant 0 : i32
    %c0_i32_1 = arith.constant 0 : i32
    return %c0_i32, %c0_i32_0 : i32, i32
  }
  func.func @transform_14(%arg0: i32) -> (i32, i32) {
    %c0_i32 = arith.constant 0 : i32
    %c0_i32_0 = arith.constant 0 : i32
    %c0_i32_1 = arith.constant 0 : i32
    return %c0_i32, %c0_i32_0 : i32, i32
  }
  func.func @transform_15(%arg0: i32) -> (i32, i32) {
    %c0_i32 = arith.constant 0 : i32
    %c0_i32_0 = arith.constant 0 : i32
    %c0_i32_1 = arith.constant 0 : i32
    return %c0_i32, %c0_i32_0 : i32, i32
  }
}

</mosaic_0001>

<llo_original>
// kernel: tpu_custom_call.1
$region0: #{tpu_custom_call.1}
  #allocation0 [shape = 'u32[]', space=smem, size = 0x4, offset = 0x4, fixed_abs, tag = 'smem constant byte address 0x4 - core index']
  #allocation1 [shape = 'u32[144,128]{1,0:T(1,128)}', space=vmem, size = 0x12000, scoped, tag = 'internal scratch']
  %s0 = inlined_call_operand.vmem [shape: f32[16,8], index: 0, kind: input, shape index: {}]
  %s1 = inlined_call_operand.vmem [shape: f32[16,16], index: 1, kind: input, shape index: {}]
  %s2 = inlined_call_operand.vmem [shape: f32[2,16], index: 2, kind: input, shape index: {}]
  %s3 = inlined_call_operand.vmem [shape: f32[8,64], index: 3, kind: input, shape index: {}]
  %s4 = inlined_call_operand.vmem [shape: f32[1,64], index: 4, kind: input, shape index: {}]
  %s5 = inlined_call_operand.vmem [shape: f32[1,32], index: 5, kind: input, shape index: {}]
  %s6 = inlined_call_operand.vmem [shape: f32[1,32], index: 6, kind: input, shape index: {}]
  %s7 = inlined_call_operand.vmem [shape: f32[32,64], index: 7, kind: input, shape index: {}]
  %s8 = inlined_call_operand.vmem [shape: f32[1,64], index: 8, kind: input, shape index: {}]
  %s9 = inlined_call_operand.vmem [shape: f32[1,32], index: 9, kind: input, shape index: {}]
  %s10 = inlined_call_operand.vmem [shape: f32[1,32], index: 10, kind: input, shape index: {}]
  %s11 = inlined_call_operand.vmem [shape: f32[32,16], index: 11, kind: input, shape index: {}]
  %s12 = inlined_call_operand.vmem [shape: f32[1,16], index: 12, kind: input, shape index: {}]
  %s13 = inlined_call_operand.vmem [shape: f32[1,8], index: 13, kind: input, shape index: {}]
  %s14 = inlined_call_operand.vmem [shape: f32[1,8], index: 14, kind: input, shape index: {}]
  %s15 = inlined_call_operand.hbm [shape: f32[2,8], index: 15, kind: output, shape index: {}]
  %s16 = sld [smem:[#allocation0]]
  $region70: #{tpu_custom_call.1} parent=0
    _
  %s18 = ssub.s32 1, %s16
  %s19 = scalar_select 0, %s18, %s16
  $region1: #{tpu_custom_call.1} parent=0
    #allocation2 [shape = 'u8[1024]{0}', space=vmem, size = 0x400, scoped, tag = 'output window, operand 0, single buffered']
    #allocation3 [shape = 's32[1]{0}', space=sflag, size = 0x4, scoped, tag = 'scoped memory for tpu_custom_call.1']
    %20 = vsyncpa [#allocation3], 0
    // Predicated region
    $region2: #{tpu_custom_call.1} parent=1 // pred_check
      _
    $region3: #{tpu_custom_call.1} parent=1 // pred_check_branch
      %22 = sbr.rel (0) target = $region5
    $region4: #{tpu_custom_call.1} parent=1 // pred_region
      _
    $region5: #{tpu_custom_call.1} parent=1 // pred_fallthru
      _
    // Predicated region
    $region6: #{tpu_custom_call.1} parent=1 // pred_check
      _
    $region7: #{tpu_custom_call.1} parent=1 // pred_check_branch
      %24 = sbr.rel (0) target = $region9
    $region8: #{tpu_custom_call.1} parent=1 // pred_region
      _
    $region9: #{tpu_custom_call.1} parent=1 // pred_fallthru
      _
    // Predicated region
    $region10: #{tpu_custom_call.1} parent=1 // pred_check
      _
    $region11: #{tpu_custom_call.1} parent=1 // pred_check_branch
      %26 = sbr.rel (0) target = $region13
    $region12: #{tpu_custom_call.1} parent=1 // pred_region
      _
    $region13: #{tpu_custom_call.1} parent=1 // pred_fallthru
      _
    // Predicated region
    $region14: #{tpu_custom_call.1} parent=1 // pred_check
      _
    $region15: #{tpu_custom_call.1} parent=1 // pred_check_branch
      %28 = sbr.rel (0) target = $region17
    $region16: #{tpu_custom_call.1} parent=1 // pred_region
      _
    $region17: #{tpu_custom_call.1} parent=1 // pred_fallthru
      _
    // Predicated region
    $region18: #{tpu_custom_call.1} parent=1 // pred_check
      _
    $region19: #{tpu_custom_call.1} parent=1 // pred_check_branch
      %30 = sbr.rel (0) target = $region21
    $region20: #{tpu_custom_call.1} parent=1 // pred_region
      _
    $region21: #{tpu_custom_call.1} parent=1 // pred_fallthru
      _
    // Predicated region
    $region22: #{tpu_custom_call.1} parent=1 // pred_check
      _
    $region23: #{tpu_custom_call.1} parent=1 // pred_check_branch
      %32 = sbr.rel (0) target = $region25
    $region24: #{tpu_custom_call.1} parent=1 // pred_region
      _
    $region25: #{tpu_custom_call.1} parent=1 // pred_fallthru
      _
    // Predicated region
    $region26: #{tpu_custom_call.1} parent=1 // pred_check
      _
    $region27: #{tpu_custom_call.1} parent=1 // pred_check_branch
      %34 = sbr.rel (0) target = $region29
    $region28: #{tpu_custom_call.1} parent=1 // pred_region
      _
    $region29: #{tpu_custom_call.1} parent=1 // pred_fallthru
      _
    // Predicated region
    $region30: #{tpu_custom_call.1} parent=1 // pred_check
      _
    $region31: #{tpu_custom_call.1} parent=1 // pred_check_branch
      %36 = sbr.rel (0) target = $region33
    $region32: #{tpu_custom_call.1} parent=1 // pred_region
      _
    $region33: #{tpu_custom_call.1} parent=1 // pred_fallthru
      _
    // Predicated region
    $region34: #{tpu_custom_call.1} parent=1 // pred_check
      _
    $region35: #{tpu_custom_call.1} parent=1 // pred_check_branch
      %38 = sbr.rel (0) target = $region37
    $region36: #{tpu_custom_call.1} parent=1 // pred_region
      _
    $region37: #{tpu_custom_call.1} parent=1 // pred_fallthru
      _
    // Predicated region
    $region38: #{tpu_custom_call.1} parent=1 // pred_check
      _
    $region39: #{tpu_custom_call.1} parent=1 // pred_check_branch
      %40 = sbr.rel (0) target = $region41
    $region40: #{tpu_custom_call.1} parent=1 // pred_region
      _
    $region41: #{tpu_custom_call.1} parent=1 // pred_fallthru
      _
    // Predicated region
    $region42: #{tpu_custom_call.1} parent=1 // pred_check
      _
    $region43: #{tpu_custom_call.1} parent=1 // pred_check_branch
      %42 = sbr.rel (0) target = $region45
    $region44: #{tpu_custom_call.1} parent=1 // pred_region
      _
    $region45: #{tpu_custom_call.1} parent=1 // pred_fallthru
      _
    // Predicated region
    $region46: #{tpu_custom_call.1} parent=1 // pred_check
      _
    $region47: #{tpu_custom_call.1} parent=1 // pred_check_branch
      %44 = sbr.rel (0) target = $region49
    $region48: #{tpu_custom_call.1} parent=1 // pred_region
      _
    $region49: #{tpu_custom_call.1} parent=1 // pred_fallthru
      _
    // Predicated region
    $region50: #{tpu_custom_call.1} parent=1 // pred_check
      _
    $region51: #{tpu_custom_call.1} parent=1 // pred_check_branch
      %46 = sbr.rel (0) target = $region53
    $region52: #{tpu_custom_call.1} parent=1 // pred_region
      _
    $region53: #{tpu_custom_call.1} parent=1 // pred_fallthru
      _
    // Predicated region
    $region54: #{tpu_custom_call.1} parent=1 // pred_check
      _
    $region55: #{tpu_custom_call.1} parent=1 // pred_check_branch
      %48 = sbr.rel (0) target = $region57
    $region56: #{tpu_custom_call.1} parent=1 // pred_region
      _
    $region57: #{tpu_custom_call.1} parent=1 // pred_fallthru
      _
    // Predicated region
    $region58: #{tpu_custom_call.1} parent=1 // pred_check
      _
    $region59: #{tpu_custom_call.1} parent=1 // pred_check_branch
      %50 = sbr.rel (0) target = $region61
    $region60: #{tpu_custom_call.1} parent=1 // pred_region
      _
    $region61: #{tpu_custom_call.1} parent=1 // pred_fallthru
      _
    %v51 = vld [vmem:[%s1] sm:$0xff]
    %v52 = vld [vmem:[%s1 + $0x8] sm:$0xff]
    %v53 = vld [vmem:[%s0] sm:$0xff]
    %v54 = vld [vmem:[%s0 + $0x8] sm:$0xff]
    %v55 = vld [vmem:[%s3] sm:$0xff]
    %v56 = vld [vmem:[%s4] sm:$0x1]
    %v57 = vld [vmem:[%s5] sm:$0x1]
    %v58 = vld [vmem:[%s6] sm:$0x1]
    %v60 = vlaneseq
    %v61 = vshrl.u32 %v60, 7
    %v62 = vsub.s32 0, %v61
    %v63 = vrot.slane %v56, %v62
    %vm65 = vcmask 64512
    %v67 = vsel %vm65, %v53, 0
    %v70 = vsel %vm65, %v54, 0
    %72 = vmatprep.subr.mxu0 0.0
    %73 = vmatpush1.msra.mxu0 %v55
    %74 = vmatprep.subr.mxu0 0.0
    %75 = vmatpush1.msra.mxu0 0.0
    %76 = vmatprep.subr.mxu0 0.0
    %77 = vmatpush1.msra.mxu0 0.0
    %78 = vmatprep.subr.mxu0 0.0
    %79 = vmatpush1.msra.mxu0 0.0
    %80 = vmatprep.subr.mxu0 0.0
    %81 = vmatpush1.msra.mxu0 0.0
    %82 = vmatprep.subr.mxu0 0.0
    %83 = vmatpush1.msra.mxu0 0.0
    %84 = vmatprep.subr.mxu0 0.0
    %85 = vmatpush1.msra.mxu0 0.0
    %86 = vmatprep.subr.mxu0 0.0
    %87 = vmatpush1.msra.mxu0 0.0
    %88 = vmatprep.subr.mxu0 0.0
    %89 = vmatpush1.msra.mxu0 0.0
    %90 = vmatprep.subr.mxu0 0.0
    %91 = vmatpush1.msra.mxu0 0.0
    %92 = vmatprep.subr.mxu0 0.0
    %93 = vmatpush1.msra.mxu0 0.0
    %94 = vmatprep.subr.mxu0 0.0
    %95 = vmatpush1.msra.mxu0 0.0
    %96 = vmatprep.subr.mxu0 0.0
    %97 = vmatpush1.msra.mxu0 0.0
    %98 = vmatprep.subr.mxu0 0.0
    %99 = vmatpush1.msra.mxu0 0.0
    %100 = vmatprep.subr.mxu0 0.0
    %101 = vmatpush1.msra.mxu0 0.0
    %102 = vmatprep.subr.mxu0 0.0
    %103 = vmatpush1.msra.mxu0 0.0
    %104 = vmatprep.subr.mxu0 0.0
    %105 = vmatpush1.msra.mxu0 0.0
    %106 = vmatprep.subr.mxu0 0.0
    %107 = vmatpush1.msra.mxu0 0.0
    %108 = vmatprep.subr.mxu0 0.0
    %109 = vmatpush1.msra.mxu0 0.0
    %110 = vmatprep.subr.mxu0 0.0
    %111 = vmatpush1.msra.mxu0 0.0
    %112 = vmatprep.subr.mxu0 0.0
    %113 = vmatpush1.msra.mxu0 0.0
    %114 = vmatprep.subr.mxu0 0.0
    %115 = vmatpush1.msra.mxu0 0.0
    %116 = vmatprep.subr.mxu0 0.0
    %117 = vmatpush1.msra.mxu0 0.0
    %118 = vmatprep.subr.mxu0 0.0
    %119 = vmatpush1.msra.mxu0 0.0
    %120 = vmatprep.subr.mxu0 0.0
    %121 = vmatpush1.msra.mxu0 0.0
    %122 = vmatprep.subr.mxu0 0.0
    %123 = vmatpush1.msra.mxu0 0.0
    %124 = vmatprep.subr.mxu0 0.0
    %125 = vmatpush1.msra.mxu0 0.0
    %126 = vmatprep.subr.mxu0 0.0
    %127 = vmatpush1.msra.mxu0 0.0
    %128 = vmatprep.subr.mxu0 0.0
    %129 = vmatpush1.msra.mxu0 0.0
    %130 = vmatprep.subr.mxu0 0.0
    %131 = vmatpush1.msra.mxu0 0.0
    %132 = vmatprep.subr.mxu0 0.0
    %133 = vmatpush1.msra.mxu0 0.0
    %134 = vmatprep.subr.mxu0 0.0
    %135 = vmatpush1.msra.mxu0 0.0
    %136 = vmatprep.mubr.f32.mxu0 0.0
    %137 = vmatmul.mubr.f32.gmra.mrb[0].mxu0 %v67
    %v138 = vpop.f32.mrb[0].mxu0
    %v139 = vadd.f32 %v63, %v138
    %v140 = vpop.f32.mrb[0].mxu0
    %141 = vmatprep.mubr.f32.mxu0 0.0
    %142 = vmatmul.mubr.f32.gmra.mrb[0].mxu0 %v70
    %v143 = vpop.f32.mrb[0].mxu0
    %v144 = vadd.f32 %v63, %v143
    %v145 = vpop.f32.mrb[0].mxu0
    %146 = vdwg.mxu0
    %v149 = vcombine.high %v139, %v139
    %v151 = vunpack.c.l.s4 1966171168
    %v152 = vunpack.c.0.s8 %v151
    %v153 = vlaneseq
    %v154 = vshrl.u32 %v153, 7
    %v155 = vsub.s32 %v152, %v154
    %v156 = vrot.slane %v139, %v155
    %v158 = vunpack.c.l.s4 1966171168
    %v159 = vunpack.c.0.s8 %v158
    %v160 = vlaneseq
    %v161 = vshrl.u32 %v160, 7
    %v162 = vsub.s32 %v159, %v161
    %v163 = vrot.slane %v149, %v162
    %v164 = vcombine.high %v156, %v156
    %v165 = vcombine.high %v163, %v163
    %v167 = vunpack.c.l.s4 1966171168
    %v168 = vunpack.c.0.s8 %v167
    %v169 = vlaneseq
    %v170 = vshrl.u32 %v169, 7
    %v171 = vsub.s32 %v168, %v170
    %v172 = vrot.slane %v156, %v171
    %v174 = vunpack.c.l.s4 1966171168
    %v175 = vunpack.c.0.s8 %v174
    %v176 = vlaneseq
    %v177 = vshrl.u32 %v176, 7
    %v178 = vsub.s32 %v175, %v177
    %v179 = vrot.slane %v163, %v178
    %v181 = vunpack.c.l.s4 1966171168
    %v182 = vunpack.c.0.s8 %v181
    %v183 = vlaneseq
    %v184 = vshrl.u32 %v183, 7
    %v185 = vsub.s32 %v182, %v184
    %v186 = vrot.slane %v164, %v185
    %v188 = vunpack.c.l.s4 1966171168
    %v189 = vunpack.c.0.s8 %v188
    %v190 = vlaneseq
    %v191 = vshrl.u32 %v190, 7
    %v192 = vsub.s32 %v189, %v191
    %v193 = vrot.slane %v165, %v192
    %v194 = vcombine.high %v172, %v172
    %v195 = vcombine.high %v179, %v179
    %v196 = vcombine.high %v186, %v186
    %v197 = vcombine.high %v193, %v193
    %v198 = vcombine.high %v144, %v144
    %v200 = vunpack.c.l.s4 1966171168
    %v201 = vunpack.c.0.s8 %v200
    %v202 = vlaneseq
    %v203 = vshrl.u32 %v202, 7
    %v204 = vsub.s32 %v201, %v203
    %v205 = vrot.slane %v144, %v204
    %v207 = vunpack.c.l.s4 1966171168
    %v208 = vunpack.c.0.s8 %v207
    %v209 = vlaneseq
    %v210 = vshrl.u32 %v209, 7
    %v211 = vsub.s32 %v208, %v210
    %v212 = vrot.slane %v198, %v211
    %v213 = vcombine.high %v205, %v205
    %v214 = vcombine.high %v212, %v212
    %v216 = vunpack.c.l.s4 1966171168
    %v217 = vunpack.c.0.s8 %v216
    %v218 = vlaneseq
    %v219 = vshrl.u32 %v218, 7
    %v220 = vsub.s32 %v217, %v219
    %v221 = vrot.slane %v205, %v220
    %v223 = vunpack.c.l.s4 1966171168
    %v224 = vunpack.c.0.s8 %v223
    %v225 = vlaneseq
    %v226 = vshrl.u32 %v225, 7
    %v227 = vsub.s32 %v224, %v226
    %v228 = vrot.slane %v212, %v227
    %v230 = vunpack.c.l.s4 1966171168
    %v231 = vunpack.c.0.s8 %v230
    %v232 = vlaneseq
    %v233 = vshrl.u32 %v232, 7
    %v234 = vsub.s32 %v231, %v233
    %v235 = vrot.slane %v213, %v234
    %v237 = vunpack.c.l.s4 1966171168
    %v238 = vunpack.c.0.s8 %v237
    %v239 = vlaneseq
    %v240 = vshrl.u32 %v239, 7
    %v241 = vsub.s32 %v238, %v240
    %v242 = vrot.slane %v214, %v241
    %v243 = vcombine.high %v221, %v221
    %v244 = vcombine.high %v228, %v228
    %v245 = vcombine.high %v235, %v235
    %v246 = vcombine.high %v242, %v242
    %v247 = vlaneseq
    %v248 = vshrl.u32 %v247, 7
    %v249 = vsub.s32 0, %v248
    %v250 = vrot.slane %v172, %v249
    %v251 = vlaneseq
    %v252 = vshrl.u32 %v251, 7
    %v253 = vsub.s32 0, %v252
    %v254 = vrot.slane %v186, %v253
    %v255 = vlaneseq
    %v256 = vshrl.u32 %v255, 7
    %v257 = vsub.s32 0, %v256
    %v258 = vrot.slane %v194, %v257
    %v259 = vlaneseq
    %v260 = vshrl.u32 %v259, 7
    %v261 = vsub.s32 0, %v260
    %v262 = vrot.slane %v196, %v261
    %v263 = vlaneseq
    %v264 = vshrl.u32 %v263, 7
    %v265 = vsub.s32 0, %v264
    %v266 = vrot.slane %v179, %v265
    %v267 = vlaneseq
    %v268 = vshrl.u32 %v267, 7
    %v269 = vsub.s32 0, %v268
    %v270 = vrot.slane %v193, %v269
    %v271 = vlaneseq
    %v272 = vshrl.u32 %v271, 7
    %v273 = vsub.s32 0, %v272
    %v274 = vrot.slane %v195, %v273
    %v275 = vlaneseq
    %v276 = vshrl.u32 %v275, 7
    %v277 = vsub.s32 0, %v276
    %v278 = vrot.slane %v197, %v277
    %v279 = vlaneseq
    %v280 = vshrl.u32 %v279, 7
    %v281 = vsub.s32 0, %v280
    %v282 = vrot.slane %v221, %v281
    %v283 = vlaneseq
    %v284 = vshrl.u32 %v283, 7
    %v285 = vsub.s32 0, %v284
    %v286 = vrot.slane %v235, %v285
    %v287 = vlaneseq
    %v288 = vshrl.u32 %v287, 7
    %v289 = vsub.s32 0, %v288
    %v290 = vrot.slane %v243, %v289
    %v291 = vlaneseq
    %v292 = vshrl.u32 %v291, 7
    %v293 = vsub.s32 0, %v292
    %v294 = vrot.slane %v245, %v293
    %v295 = vlaneseq
    %v296 = vshrl.u32 %v295, 7
    %v297 = vsub.s32 0, %v296
    %v298 = vrot.slane %v228, %v297
    %v299 = vlaneseq
    %v300 = vshrl.u32 %v299, 7
    %v301 = vsub.s32 0, %v300
    %v302 = vrot.slane %v242, %v301
    %v303 = vlaneseq
    %v304 = vshrl.u32 %v303, 7
    %v305 = vsub.s32 0, %v304
    %v306 = vrot.slane %v244, %v305
    %v307 = vlaneseq
    %v308 = vshrl.u32 %v307, 7
    %v309 = vsub.s32 0, %v308
    %v310 = vrot.slane %v246, %v309
    %311 = vrot.lane.b32.xlu0 %v250, 96
    %v312 = vpop.permute.xlu0 %311
    %313 = vrot.lane.b32.xlu0 %v254, 96
    %v314 = vpop.permute.xlu0 %313
    %315 = vrot.lane.b32.xlu0 %v258, 96
    %v316 = vpop.permute.xlu0 %315
    %317 = vrot.lane.b32.xlu0 %v262, 96
    %v318 = vpop.permute.xlu0 %317
    %319 = vrot.lane.b32.xlu0 %v266, 96
    %v320 = vpop.permute.xlu0 %319
    %321 = vrot.lane.b32.xlu0 %v270, 96
    %v322 = vpop.permute.xlu0 %321
    %323 = vrot.lane.b32.xlu0 %v274, 96
    %v324 = vpop.permute.xlu0 %323
    %325 = vrot.lane.b32.xlu0 %v278, 96
    %v326 = vpop.permute.xlu0 %325
    %327 = vrot.lane.b32.xlu0 %v282, 96
    %v328 = vpop.permute.xlu0 %327
    %329 = vrot.lane.b32.xlu0 %v286, 96
    %v330 = vpop.permute.xlu0 %329
    %331 = vrot.lane.b32.xlu0 %v290, 96
    %v332 = vpop.permute.xlu0 %331
    %333 = vrot.lane.b32.xlu0 %v294, 96
    %v334 = vpop.permute.xlu0 %333
    %335 = vrot.lane.b32.xlu0 %v298, 96
    %v336 = vpop.permute.xlu0 %335
    %337 = vrot.lane.b32.xlu0 %v302, 96
    %v338 = vpop.permute.xlu0 %337
    %339 = vrot.lane.b32.xlu0 %v306, 96
    %v340 = vpop.permute.xlu0 %339
    %341 = vrot.lane.b32.xlu0 %v310, 96
    %v342 = vpop.permute.xlu0 %341
    %v359 = vadd.f32 %v139, %v312
    %v360 = vadd.f32 %v144, %v312
    %v361 = vadd.f32 %v139, %v314
    %v362 = vadd.f32 %v144, %v314
    %v363 = vadd.f32 %v139, %v316
    %v364 = vadd.f32 %v144, %v316
    %v365 = vadd.f32 %v139, %v318
    %v366 = vadd.f32 %v144, %v318
    %v367 = vadd.f32 %v139, %v320
    %v368 = vadd.f32 %v144, %v320
    %v369 = vadd.f32 %v139, %v322
    %v370 = vadd.f32 %v144, %v322
    %v371 = vadd.f32 %v139, %v324
    %v372 = vadd.f32 %v144, %v324
    %v373 = vadd.f32 %v139, %v326
    %v374 = vadd.f32 %v144, %v326
    %v375 = vadd.f32 %v139, %v328
    %v376 = vadd.f32 %v144, %v328
    %v377 = vadd.f32 %v139, %v330
    %v378 = vadd.f32 %v144, %v330
    %v379 = vadd.f32 %v139, %v332
    %v380 = vadd.f32 %v144, %v332
    %v381 = vadd.f32 %v139, %v334
    %v382 = vadd.f32 %v144, %v334
    %v383 = vadd.f32 %v139, %v336
    %v384 = vadd.f32 %v144, %v336
    %v385 = vadd.f32 %v139, %v338
    %v386 = vadd.f32 %v144, %v338
    %v387 = vadd.f32 %v139, %v340
    %v388 = vadd.f32 %v144, %v340
    %v389 = vadd.f32 %v139, %v342
    %v390 = vadd.f32 %v144, %v342
    %vm391 = vcmp.gt.f32.partialorder %v359, 0.0
    %vm392 = vcmp.gt.f32.partialorder %v360, 0.0
    %vm393 = vcmp.gt.f32.partialorder %v361, 0.0
    %vm394 = vcmp.gt.f32.partialorder %v362, 0.0
    %vm395 = vcmp.gt.f32.partialorder %v363, 0.0
    %vm396 = vcmp.gt.f32.partialorder %v364, 0.0
    %vm397 = vcmp.gt.f32.partialorder %v365, 0.0
    %vm398 = vcmp.gt.f32.partialorder %v366, 0.0
    %vm399 = vcmp.gt.f32.partialorder %v367, 0.0
    %vm400 = vcmp.gt.f32.partialorder %v368, 0.0
    %vm401 = vcmp.gt.f32.partialorder %v369, 0.0
    %vm402 = vcmp.gt.f32.partialorder %v370, 0.0
    %vm403 = vcmp.gt.f32.partialorder %v371, 0.0
    %vm404 = vcmp.gt.f32.partialorder %v372, 0.0
    %vm405 = vcmp.gt.f32.partialorder %v373, 0.0
    %vm406 = vcmp.gt.f32.partialorder %v374, 0.0
    %vm407 = vcmp.gt.f32.partialorder %v375, 0.0
    %vm408 = vcmp.gt.f32.partialorder %v376, 0.0
    %vm409 = vcmp.gt.f32.partialorder %v377, 0.0
    %vm410 = vcmp.gt.f32.partialorder %v378, 0.0
    %vm411 = vcmp.gt.f32.partialorder %v379, 0.0
    %vm412 = vcmp.gt.f32.partialorder %v380, 0.0
    %vm413 = vcmp.gt.f32.partialorder %v381, 0.0
    %vm414 = vcmp.gt.f32.partialorder %v382, 0.0
    %vm415 = vcmp.gt.f32.partialorder %v383, 0.0
    %vm416 = vcmp.gt.f32.partialorder %v384, 0.0
    %vm417 = vcmp.gt.f32.partialorder %v385, 0.0
    %vm418 = vcmp.gt.f32.partialorder %v386, 0.0
    %vm419 = vcmp.gt.f32.partialorder %v387, 0.0
    %vm420 = vcmp.gt.f32.partialorder %v388, 0.0
    %vm421 = vcmp.gt.f32.partialorder %v389, 0.0
    %vm422 = vcmp.gt.f32.partialorder %v390, 0.0
    %v423 = vmul.f32 %v359, 0.2
    %v424 = vmul.f32 %v360, 0.2
    %v425 = vmul.f32 %v361, 0.2
    %v426 = vmul.f32 %v362, 0.2
    %v427 = vmul.f32 %v363, 0.2
    %v428 = vmul.f32 %v364, 0.2
    %v429 = vmul.f32 %v365, 0.2
    %v430 = vmul.f32 %v366, 0.2
    %v431 = vmul.f32 %v367, 0.2
    %v432 = vmul.f32 %v368, 0.2
    %v433 = vmul.f32 %v369, 0.2
    %v434 = vmul.f32 %v370, 0.2
    %v435 = vmul.f32 %v371, 0.2
    %v436 = vmul.f32 %v372, 0.2
    %v437 = vmul.f32 %v373, 0.2
    %v438 = vmul.f32 %v374, 0.2
    %v439 = vmul.f32 %v375, 0.2
    %v440 = vmul.f32 %v376, 0.2
    %v441 = vmul.f32 %v377, 0.2
    %v442 = vmul.f32 %v378, 0.2
    %v443 = vmul.f32 %v379, 0.2
    %v444 = vmul.f32 %v380, 0.2
    %v445 = vmul.f32 %v381, 0.2
    %v446 = vmul.f32 %v382, 0.2
    %v447 = vmul.f32 %v383, 0.2
    %v448 = vmul.f32 %v384, 0.2
    %v449 = vmul.f32 %v385, 0.2
    %v450 = vmul.f32 %v386, 0.2
    %v451 = vmul.f32 %v387, 0.2
    %v452 = vmul.f32 %v388, 0.2
    %v453 = vmul.f32 %v389, 0.2
    %v454 = vmul.f32 %v390, 0.2
    %v455 = vsel %vm391, %v359, %v423
    %v456 = vsel %vm392, %v360, %v424
    %v457 = vsel %vm393, %v361, %v425
    %v458 = vsel %vm394, %v362, %v426
    %v459 = vsel %vm395, %v363, %v427
    %v460 = vsel %vm396, %v364, %v428
    %v461 = vsel %vm397, %v365, %v429
    %v462 = vsel %vm398, %v366, %v430
    %v463 = vsel %vm399, %v367, %v431
    %v464 = vsel %vm400, %v368, %v432
    %v465 = vsel %vm401, %v369, %v433
    %v466 = vsel %vm402, %v370, %v434
    %v467 = vsel %vm403, %v371, %v435
    %v468 = vsel %vm404, %v372, %v436
    %v469 = vsel %vm405, %v373, %v437
    %v470 = vsel %vm406, %v374, %v438
    %v471 = vsel %vm407, %v375, %v439
    %v472 = vsel %vm408, %v376, %v440
    %v473 = vsel %vm409, %v377, %v441
    %v474 = vsel %vm410, %v378, %v442
    %v475 = vsel %vm411, %v379, %v443
    %v476 = vsel %vm412, %v380, %v444
    %v477 = vsel %vm413, %v381, %v445
    %v478 = vsel %vm414, %v382, %v446
    %v479 = vsel %vm415, %v383, %v447
    %v480 = vsel %vm416, %v384, %v448
    %v481 = vsel %vm417, %v385, %v449
    %v482 = vsel %vm418, %v386, %v450
    %v483 = vsel %vm419, %v387, %v451
    %v484 = vsel %vm420, %v388, %v452
    %v485 = vsel %vm421, %v389, %v453
    %v486 = vsel %vm422, %v390, %v454
    %v488 = vlaneseq
    %v489 = vshrl.u32 %v488, 7
    %v490 = vsub.s32 0, %v489
    %v491 = vrot.slane %v57, %v490
    %v493 = vmul.f32 %v455, %v491
    %v494 = vmul.f32 %v456, %v491
    %v495 = vmul.f32 %v457, %v491
    %v496 = vmul.f32 %v458, %v491
    %v497 = vmul.f32 %v459, %v491
    %v498 = vmul.f32 %v460, %v491
    %v499 = vmul.f32 %v461, %v491
    %v500 = vmul.f32 %v462, %v491
    %v501 = vmul.f32 %v463, %v491
    %v502 = vmul.f32 %v464, %v491
    %v503 = vmul.f32 %v465, %v491
    %v504 = vmul.f32 %v466, %v491
    %v505 = vmul.f32 %v467, %v491
    %v506 = vmul.f32 %v468, %v491
    %v507 = vmul.f32 %v469, %v491
    %v508 = vmul.f32 %v470, %v491
    %v509 = vmul.f32 %v471, %v491
    %v510 = vmul.f32 %v472, %v491
    %v511 = vmul.f32 %v473, %v491
    %v512 = vmul.f32 %v474, %v491
    %v513 = vmul.f32 %v475, %v491
    %v514 = vmul.f32 %v476, %v491
    %v515 = vmul.f32 %v477, %v491
    %v516 = vmul.f32 %v478, %v491
    %v517 = vmul.f32 %v479, %v491
    %v518 = vmul.f32 %v480, %v491
    %v519 = vmul.f32 %v481, %v491
    %v520 = vmul.f32 %v482, %v491
    %v521 = vmul.f32 %v483, %v491
    %v522 = vmul.f32 %v484, %v491
    %v523 = vmul.f32 %v485, %v491
    %v524 = vmul.f32 %v486, %v491
    %vm525 = vcmask 261120
    %v526 = vsel %vm525, %v493, 0.0
    %527 = vadd.xlane.f32.xlu0 %v526
    %v528 = vpop.xlane.xlu0 %527
    %v529 = vsel %vm525, %v494, 0.0
    %530 = vadd.xlane.f32.xlu0 %v529
    %v531 = vpop.xlane.xlu0 %530
    %v532 = vsel %vm525, %v495, 0.0
    %533 = vadd.xlane.f32.xlu0 %v532
    %v534 = vpop.xlane.xlu0 %533
    %v535 = vsel %vm525, %v496, 0.0
    %536 = vadd.xlane.f32.xlu0 %v535
    %v537 = vpop.xlane.xlu0 %536
    %v538 = vsel %vm525, %v497, 0.0
    %539 = vadd.xlane.f32.xlu0 %v538
    %v540 = vpop.xlane.xlu0 %539
    %v541 = vsel %vm525, %v498, 0.0
    %542 = vadd.xlane.f32.xlu0 %v541
    %v543 = vpop.xlane.xlu0 %542
    %v544 = vsel %vm525, %v499, 0.0
    %545 = vadd.xlane.f32.xlu0 %v544
    %v546 = vpop.xlane.xlu0 %545
    %v547 = vsel %vm525, %v500, 0.0
    %548 = vadd.xlane.f32.xlu0 %v547
    %v549 = vpop.xlane.xlu0 %548
    %v550 = vsel %vm525, %v501, 0.0
    %551 = vadd.xlane.f32.xlu0 %v550
    %v552 = vpop.xlane.xlu0 %551
    %v553 = vsel %vm525, %v502, 0.0
    %554 = vadd.xlane.f32.xlu0 %v553
    %v555 = vpop.xlane.xlu0 %554
    %v556 = vsel %vm525, %v503, 0.0
    %557 = vadd.xlane.f32.xlu0 %v556
    %v558 = vpop.xlane.xlu0 %557
    %v559 = vsel %vm525, %v504, 0.0
    %560 = vadd.xlane.f32.xlu0 %v559
    %v561 = vpop.xlane.xlu0 %560
    %v562 = vsel %vm525, %v505, 0.0
    %563 = vadd.xlane.f32.xlu0 %v562
    %v564 = vpop.xlane.xlu0 %563
    %v565 = vsel %vm525, %v506, 0.0
    %566 = vadd.xlane.f32.xlu0 %v565
    %v567 = vpop.xlane.xlu0 %566
    %v568 = vsel %vm525, %v507, 0.0
    %569 = vadd.xlane.f32.xlu0 %v568
    %v570 = vpop.xlane.xlu0 %569
    %v571 = vsel %vm525, %v508, 0.0
    %572 = vadd.xlane.f32.xlu0 %v571
    %v573 = vpop.xlane.xlu0 %572
    %v574 = vsel %vm525, %v509, 0.0
    %575 = vadd.xlane.f32.xlu0 %v574
    %v576 = vpop.xlane.xlu0 %575
    %v577 = vsel %vm525, %v510, 0.0
    %578 = vadd.xlane.f32.xlu0 %v577
    %v579 = vpop.xlane.xlu0 %578
    %v580 = vsel %vm525, %v511, 0.0
    %581 = vadd.xlane.f32.xlu0 %v580
    %v582 = vpop.xlane.xlu0 %581
    %v583 = vsel %vm525, %v512, 0.0
    %584 = vadd.xlane.f32.xlu0 %v583
    %v585 = vpop.xlane.xlu0 %584
    %v586 = vsel %vm525, %v513, 0.0
    %587 = vadd.xlane.f32.xlu0 %v586
    %v588 = vpop.xlane.xlu0 %587
    %v589 = vsel %vm525, %v514, 0.0
    %590 = vadd.xlane.f32.xlu0 %v589
    %v591 = vpop.xlane.xlu0 %590
    %v592 = vsel %vm525, %v515, 0.0
    %593 = vadd.xlane.f32.xlu0 %v592
    %v594 = vpop.xlane.xlu0 %593
    %v595 = vsel %vm525, %v516, 0.0
    %596 = vadd.xlane.f32.xlu0 %v595
    %v597 = vpop.xlane.xlu0 %596
    %v598 = vsel %vm525, %v517, 0.0
    %599 = vadd.xlane.f32.xlu0 %v598
    %v600 = vpop.xlane.xlu0 %599
    %v601 = vsel %vm525, %v518, 0.0
    %602 = vadd.xlane.f32.xlu0 %v601
    %v603 = vpop.xlane.xlu0 %602
    %v604 = vsel %vm525, %v519, 0.0
    %605 = vadd.xlane.f32.xlu0 %v604
    %v606 = vpop.xlane.xlu0 %605
    %v607 = vsel %vm525, %v520, 0.0
    %608 = vadd.xlane.f32.xlu0 %v607
    %v609 = vpop.xlane.xlu0 %608
    %v610 = vsel %vm525, %v521, 0.0
    %611 = vadd.xlane.f32.xlu0 %v610
    %v612 = vpop.xlane.xlu0 %611
    %v613 = vsel %vm525, %v522, 0.0
    %614 = vadd.xlane.f32.xlu0 %v613
    %v615 = vpop.xlane.xlu0 %614
    %v616 = vsel %vm525, %v523, 0.0
    %617 = vadd.xlane.f32.xlu0 %v616
    %v618 = vpop.xlane.xlu0 %617
    %v619 = vsel %vm525, %v524, 0.0
    %620 = vadd.xlane.f32.xlu0 %v619
    %v621 = vpop.xlane.xlu0 %620
    %vm622 = vcmp.gt.f32.partialorder %v51, 0.0
    %vm623 = vcmp.gt.f32.partialorder %v52, 0.0
    %v656 = vlaneseq
    %v657 = vand.u32 %v656, 127
    %v658 = vlaneseq
    %v659 = vshrl.u32 %v658, 7
    %v660 = vsub.s32 %v657, %v659
    %v661 = vrot.slane %v528, %v660
    %v662 = vadd.s32 %v657, 4294967288
    %v663 = vlaneseq
    %v664 = vshrl.u32 %v663, 7
    %v665 = vsub.s32 %v662, %v664
    %v666 = vrot.slane %v531, %v665
    %vm667 = vcmask 130112
    %v668 = vsel %vm667, %v666, %v661
    %v669 = vlaneseq
    %v670 = vshrl.u32 %v669, 7
    %v671 = vsub.s32 %v657, %v670
    %v672 = vrot.slane %v534, %v671
    %v673 = vlaneseq
    %v674 = vshrl.u32 %v673, 7
    %v675 = vsub.s32 %v662, %v674
    %v676 = vrot.slane %v537, %v675
    %v677 = vsel %vm667, %v676, %v672
    %v678 = vlaneseq
    %v679 = vshrl.u32 %v678, 7
    %v680 = vsub.s32 %v657, %v679
    %v681 = vrot.slane %v540, %v680
    %v682 = vlaneseq
    %v683 = vshrl.u32 %v682, 7
    %v684 = vsub.s32 %v662, %v683
    %v685 = vrot.slane %v543, %v684
    %v686 = vsel %vm667, %v685, %v681
    %v687 = vlaneseq
    %v688 = vshrl.u32 %v687, 7
    %v689 = vsub.s32 %v657, %v688
    %v690 = vrot.slane %v546, %v689
    %v691 = vlaneseq
    %v692 = vshrl.u32 %v691, 7
    %v693 = vsub.s32 %v662, %v692
    %v694 = vrot.slane %v549, %v693
    %v695 = vsel %vm667, %v694, %v690
    %v696 = vlaneseq
    %v697 = vshrl.u32 %v696, 7
    %v698 = vsub.s32 %v657, %v697
    %v699 = vrot.slane %v552, %v698
    %v700 = vlaneseq
    %v701 = vshrl.u32 %v700, 7
    %v702 = vsub.s32 %v662, %v701
    %v703 = vrot.slane %v555, %v702
    %v704 = vsel %vm667, %v703, %v699
    %v705 = vlaneseq
    %v706 = vshrl.u32 %v705, 7
    %v707 = vsub.s32 %v657, %v706
    %v708 = vrot.slane %v558, %v707
    %v709 = vlaneseq
    %v710 = vshrl.u32 %v709, 7
    %v711 = vsub.s32 %v662, %v710
    %v712 = vrot.slane %v561, %v711
    %v713 = vsel %vm667, %v712, %v708
    %v714 = vlaneseq
    %v715 = vshrl.u32 %v714, 7
    %v716 = vsub.s32 %v657, %v715
    %v717 = vrot.slane %v564, %v716
    %v718 = vlaneseq
    %v719 = vshrl.u32 %v718, 7
    %v720 = vsub.s32 %v662, %v719
    %v721 = vrot.slane %v567, %v720
    %v722 = vsel %vm667, %v721, %v717
    %v723 = vlaneseq
    %v724 = vshrl.u32 %v723, 7
    %v725 = vsub.s32 %v657, %v724
    %v726 = vrot.slane %v570, %v725
    %v727 = vlaneseq
    %v728 = vshrl.u32 %v727, 7
    %v729 = vsub.s32 %v662, %v728
    %v730 = vrot.slane %v573, %v729
    %v731 = vsel %vm667, %v730, %v726
    %v732 = vlaneseq
    %v733 = vshrl.u32 %v732, 7
    %v734 = vsub.s32 %v657, %v733
    %v735 = vrot.slane %v576, %v734
    %v736 = vlaneseq
    %v737 = vshrl.u32 %v736, 7
    %v738 = vsub.s32 %v662, %v737
    %v739 = vrot.slane %v579, %v738
    %v740 = vsel %vm667, %v739, %v735
    %v741 = vlaneseq
    %v742 = vshrl.u32 %v741, 7
    %v743 = vsub.s32 %v657, %v742
    %v744 = vrot.slane %v582, %v743
    %v745 = vlaneseq
    %v746 = vshrl.u32 %v745, 7
    %v747 = vsub.s32 %v662, %v746
    %v748 = vrot.slane %v585, %v747
    %v749 = vsel %vm667, %v748, %v744
    %v750 = vlaneseq
    %v751 = vshrl.u32 %v750, 7
    %v752 = vsub.s32 %v657, %v751
    %v753 = vrot.slane %v588, %v752
    %v754 = vlaneseq
    %v755 = vshrl.u32 %v754, 7
    %v756 = vsub.s32 %v662, %v755
    %v757 = vrot.slane %v591, %v756
    %v758 = vsel %vm667, %v757, %v753
    %v759 = vlaneseq
    %v760 = vshrl.u32 %v759, 7
    %v761 = vsub.s32 %v657, %v760
    %v762 = vrot.slane %v594, %v761
    %v763 = vlaneseq
    %v764 = vshrl.u32 %v763, 7
    %v765 = vsub.s32 %v662, %v764
    %v766 = vrot.slane %v597, %v765
    %v767 = vsel %vm667, %v766, %v762
    %v768 = vlaneseq
    %v769 = vshrl.u32 %v768, 7
    %v770 = vsub.s32 %v657, %v769
    %v771 = vrot.slane %v600, %v770
    %v772 = vlaneseq
    %v773 = vshrl.u32 %v772, 7
    %v774 = vsub.s32 %v662, %v773
    %v775 = vrot.slane %v603, %v774
    %v776 = vsel %vm667, %v775, %v771
    %v777 = vlaneseq
    %v778 = vshrl.u32 %v777, 7
    %v779 = vsub.s32 %v657, %v778
    %v780 = vrot.slane %v606, %v779
    %v781 = vlaneseq
    %v782 = vshrl.u32 %v781, 7
    %v783 = vsub.s32 %v662, %v782
    %v784 = vrot.slane %v609, %v783
    %v785 = vsel %vm667, %v784, %v780
    %v786 = vlaneseq
    %v787 = vshrl.u32 %v786, 7
    %v788 = vsub.s32 %v657, %v787
    %v789 = vrot.slane %v612, %v788
    %v790 = vlaneseq
    %v791 = vshrl.u32 %v790, 7
    %v792 = vsub.s32 %v662, %v791
    %v793 = vrot.slane %v615, %v792
    %v794 = vsel %vm667, %v793, %v789
    %v795 = vlaneseq
    %v796 = vshrl.u32 %v795, 7
    %v797 = vsub.s32 %v657, %v796
    %v798 = vrot.slane %v618, %v797
    %v799 = vlaneseq
    %v800 = vshrl.u32 %v799, 7
    %v801 = vsub.s32 %v662, %v800
    %v802 = vrot.slane %v621, %v801
    %v803 = vsel %vm667, %v802, %v798
    %vm804 = vcmask 1041409
    %v805 = vsel %vm804, %v677, %v668
    %vm806 = vcmask 1042434
    %v807 = vsel %vm806, %v686, %v805
    %vm808 = vcmask 1043459
    %v809 = vsel %vm808, %v695, %v807
    %vm810 = vcmask 1044484
    %v811 = vsel %vm810, %v704, %v809
    %vm812 = vcmask 1045509
    %v813 = vsel %vm812, %v713, %v811
    %vm814 = vcmask 1046534
    %v815 = vsel %vm814, %v722, %v813
    %vm816 = vcmask 1047559
    %v817 = vsel %vm816, %v731, %v815
    %v818 = vsel %vm804, %v749, %v740
    %v819 = vsel %vm806, %v758, %v818
    %v820 = vsel %vm808, %v767, %v819
    %v821 = vsel %vm810, %v776, %v820
    %v822 = vsel %vm812, %v785, %v821
    %v823 = vsel %vm814, %v794, %v822
    %v824 = vsel %vm816, %v803, %v823
    %v827 = vsel %vm622, %v817, -1e+30
    %v828 = vsel %vm623, %v824, -1e+30
    %vm829 = vcmask 130048
    %v830 = vsel %vm829, %v827, -inf
    %831 = vmax.xlane.f32.xlu0 %v830
    %v832 = vpop.xlane.xlu0 %831
    %v833 = vsel %vm829, %v828, -inf
    %834 = vmax.xlane.f32.xlu0 %v833
    %v835 = vpop.xlane.xlu0 %834
    %v836 = vsub.f32 %v827, %v832
    %v837 = vsub.f32 %v828, %v835
    %v838 = vmul.f32 %v836, 1.442695
    %v839 = vpow.pop %v838
    %v840 = vmul.f32 %v837, 1.442695
    %v841 = vpow.pop %v840
    %v842 = vsel %vm829, %v839, 0.0
    %843 = vadd.xlane.f32.xlu0 %v842
    %v844 = vpop.xlane.xlu0 %843
    %v845 = vsel %vm829, %v841, 0.0
    %846 = vadd.xlane.f32.xlu0 %v845
    %v847 = vpop.xlane.xlu0 %846
    %v848 = vmax.f32 %v844, 1e-30
    %v849 = vmax.f32 %v847, 1e-30
    %v851 = vsel %vm829, %v839, 0
    %v854 = vsel %vm829, %v841, 0
    %856 = vmatprep.subr.mxu0 0.0
    %857 = vmatpush1.msra.mxu0 %v139
    %858 = vmatprep.subr.mxu0 0.0
    %859 = vmatpush1.msra.mxu0 %v144
    %860 = vmatprep.subr.mxu0 0.0
    %861 = vmatpush1.msra.mxu0 0.0
    %862 = vmatprep.subr.mxu0 0.0
    %863 = vmatpush1.msra.mxu0 0.0
    %864 = vmatprep.subr.mxu0 0.0
    %865 = vmatpush1.msra.mxu0 0.0
    %866 = vmatprep.subr.mxu0 0.0
    %867 = vmatpush1.msra.mxu0 0.0
    %868 = vmatprep.subr.mxu0 0.0
    %869 = vmatpush1.msra.mxu0 0.0
    %870 = vmatprep.subr.mxu0 0.0
    %871 = vmatpush1.msra.mxu0 0.0
    %872 = vmatprep.subr.mxu0 0.0
    %873 = vmatpush1.msra.mxu0 0.0
    %874 = vmatprep.subr.mxu0 0.0
    %875 = vmatpush1.msra.mxu0 0.0
    %876 = vmatprep.subr.mxu0 0.0
    %877 = vmatpush1.msra.mxu0 0.0
    %878 = vmatprep.subr.mxu0 0.0
    %879 = vmatpush1.msra.mxu0 0.0
    %880 = vmatprep.subr.mxu0 0.0
    %881 = vmatpush1.msra.mxu0 0.0
    %882 = vmatprep.subr.mxu0 0.0
    %883 = vmatpush1.msra.mxu0 0.0
    %884 = vmatprep.subr.mxu0 0.0
    %885 = vmatpush1.msra.mxu0 0.0
    %886 = vmatprep.subr.mxu0 0.0
    %887 = vmatpush1.msra.mxu0 0.0
    %888 = vmatprep.subr.mxu0 0.0
    %889 = vmatpush1.msra.mxu0 0.0
    %890 = vmatprep.subr.mxu0 0.0
    %891 = vmatpush1.msra.mxu0 0.0
    %892 = vmatprep.subr.mxu0 0.0
    %893 = vmatpush1.msra.mxu0 0.0
    %894 = vmatprep.subr.mxu0 0.0
    %895 = vmatpush1.msra.mxu0 0.0
    %896 = vmatprep.subr.mxu0 0.0
    %897 = vmatpush1.msra.mxu0 0.0
    %898 = vmatprep.subr.mxu0 0.0
    %899 = vmatpush1.msra.mxu0 0.0
    %900 = vmatprep.subr.mxu0 0.0
    %901 = vmatpush1.msra.mxu0 0.0
    %902 = vmatprep.subr.mxu0 0.0
    %903 = vmatpush1.msra.mxu0 0.0
    %904 = vmatprep.subr.mxu0 0.0
    %905 = vmatpush1.msra.mxu0 0.0
    %906 = vmatprep.subr.mxu0 0.0
    %907 = vmatpush1.msra.mxu0 0.0
    %908 = vmatprep.subr.mxu0 0.0
    %909 = vmatpush1.msra.mxu0 0.0
    %910 = vmatprep.subr.mxu0 0.0
    %911 = vmatpush1.msra.mxu0 0.0
    %912 = vmatprep.subr.mxu0 0.0
    %913 = vmatpush1.msra.mxu0 0.0
    %914 = vmatprep.subr.mxu0 0.0
    %915 = vmatpush1.msra.mxu0 0.0
    %916 = vmatprep.subr.mxu0 0.0
    %917 = vmatpush1.msra.mxu0 0.0
    %918 = vmatprep.subr.mxu0 0.0
    %919 = vmatpush1.msra.mxu0 0.0
    %920 = vmatprep.mubr.f32.mxu0 0.0
    %921 = vmatmul.mubr.f32.gmra.mrb[0].mxu0 %v851
    %v922 = vpop.f32.mrb[0].mxu0
    %v923 = vadd.f32 0.0, %v922
    %v924 = vpop.f32.mrb[0].mxu0
    %925 = vmatprep.mubr.f32.mxu0 0.0
    %926 = vmatmul.mubr.f32.gmra.mrb[0].mxu0 %v854
    %v927 = vpop.f32.mrb[0].mxu0
    %v928 = vadd.f32 0.0, %v927
    %v929 = vpop.f32.mrb[0].mxu0
    %930 = vdwg.mxu0
    %v931 = vrcp.pop %v848
    %v932 = vrcp.pop %v849
    %v933 = vmul.f32 %v923, %v931
    %v934 = vmul.f32 %v928, %v932
    %v936 = vlaneseq
    %v937 = vshrl.u32 %v936, 7
    %v938 = vsub.s32 0, %v937
    %v939 = vrot.slane %v58, %v938
    %v941 = vadd.f32 %v933, %v939
    %v942 = vadd.f32 %v934, %v939
    %v943 = vmax.f32 %v941, 0.0
    %v944 = vmax.f32 %v942, 0.0
    %v945 = vld [vmem:[%s7] sm:$0xff]
    %v946 = vld [vmem:[%s7 + $0x8] sm:$0xff]
    %v947 = vld [vmem:[%s7 + $0x10] sm:$0xff]
    %v948 = vld [vmem:[%s7 + $0x18] sm:$0xff]
    %v949 = vld [vmem:[%s8] sm:$0x1]
    %v950 = vld [vmem:[%s9] sm:$0x1]
    %v951 = vld [vmem:[%s10] sm:$0x1]
    %v953 = vlaneseq
    %v954 = vshrl.u32 %v953, 7
    %v955 = vsub.s32 0, %v954
    %v956 = vrot.slane %v949, %v955
    %v959 = vsel %vm525, %v943, 0
    %v962 = vsel %vm525, %v944, 0
    %964 = vmatprep.subr.mxu0 0.0
    %965 = vmatpush1.msra.mxu0 %v945
    %966 = vmatprep.subr.mxu0 0.0
    %967 = vmatpush1.msra.mxu0 %v946
    %968 = vmatprep.subr.mxu0 0.0
    %969 = vmatpush1.msra.mxu0 %v947
    %970 = vmatprep.subr.mxu0 0.0
    %971 = vmatpush1.msra.mxu0 %v948
    %972 = vmatprep.subr.mxu0 0.0
    %973 = vmatpush1.msra.mxu0 0.0
    %974 = vmatprep.subr.mxu0 0.0
    %975 = vmatpush1.msra.mxu0 0.0
    %976 = vmatprep.subr.mxu0 0.0
    %977 = vmatpush1.msra.mxu0 0.0
    %978 = vmatprep.subr.mxu0 0.0
    %979 = vmatpush1.msra.mxu0 0.0
    %980 = vmatprep.subr.mxu0 0.0
    %981 = vmatpush1.msra.mxu0 0.0
    %982 = vmatprep.subr.mxu0 0.0
    %983 = vmatpush1.msra.mxu0 0.0
    %984 = vmatprep.subr.mxu0 0.0
    %985 = vmatpush1.msra.mxu0 0.0
    %986 = vmatprep.subr.mxu0 0.0
    %987 = vmatpush1.msra.mxu0 0.0
    %988 = vmatprep.subr.mxu0 0.0
    %989 = vmatpush1.msra.mxu0 0.0
    %990 = vmatprep.subr.mxu0 0.0
    %991 = vmatpush1.msra.mxu0 0.0
    %992 = vmatprep.subr.mxu0 0.0
    %993 = vmatpush1.msra.mxu0 0.0
    %994 = vmatprep.subr.mxu0 0.0
    %995 = vmatpush1.msra.mxu0 0.0
    %996 = vmatprep.subr.mxu0 0.0
    %997 = vmatpush1.msra.mxu0 0.0
    %998 = vmatprep.subr.mxu0 0.0
    %999 = vmatpush1.msra.mxu0 0.0
    %1000 = vmatprep.subr.mxu0 0.0
    %1001 = vmatpush1.msra.mxu0 0.0
    %1002 = vmatprep.subr.mxu0 0.0
    %1003 = vmatpush1.msra.mxu0 0.0
    %1004 = vmatprep.subr.mxu0 0.0
    %1005 = vmatpush1.msra.mxu0 0.0
    %1006 = vmatprep.subr.mxu0 0.0
    %1007 = vmatpush1.msra.mxu0 0.0
    %1008 = vmatprep.subr.mxu0 0.0
    %1009 = vmatpush1.msra.mxu0 0.0
    %1010 = vmatprep.subr.mxu0 0.0
    %1011 = vmatpush1.msra.mxu0 0.0
    %1012 = vmatprep.subr.mxu0 0.0
    %1013 = vmatpush1.msra.mxu0 0.0
    %1014 = vmatprep.subr.mxu0 0.0
    %1015 = vmatpush1.msra.mxu0 0.0
    %1016 = vmatprep.subr.mxu0 0.0
    %1017 = vmatpush1.msra.mxu0 0.0
    %1018 = vmatprep.subr.mxu0 0.0
    %1019 = vmatpush1.msra.mxu0 0.0
    %1020 = vmatprep.subr.mxu0 0.0
    %1021 = vmatpush1.msra.mxu0 0.0
    %1022 = vmatprep.subr.mxu0 0.0
    %1023 = vmatpush1.msra.mxu0 0.0
    %1024 = vmatprep.subr.mxu0 0.0
    %1025 = vmatpush1.msra.mxu0 0.0
    %1026 = vmatprep.subr.mxu0 0.0
    %1027 = vmatpush1.msra.mxu0 0.0
    %1028 = vmatprep.mubr.f32.mxu0 0.0
    %1029 = vmatmul.mubr.f32.gmra.mrb[0].mxu0 %v959
    %v1030 = vpop.f32.mrb[0].mxu0
    %v1031 = vadd.f32 %v956, %v1030
    %v1032 = vpop.f32.mrb[0].mxu0
    %1033 = vmatprep.mubr.f32.mxu0 0.0
    %1034 = vmatmul.mubr.f32.gmra.mrb[0].mxu0 %v962
    %v1035 = vpop.f32.mrb[0].mxu0
    %v1036 = vadd.f32 %v956, %v1035
    %v1037 = vpop.f32.mrb[0].mxu0
    %1038 = vdwg.mxu0
    %v1041 = vcombine.high %v1031, %v1031
    %v1043 = vunpack.c.l.s4 1966171168
    %v1044 = vunpack.c.0.s8 %v1043
    %v1045 = vlaneseq
    %v1046 = vshrl.u32 %v1045, 7
    %v1047 = vsub.s32 %v1044, %v1046
    %v1048 = vrot.slane %v1031, %v1047
    %v1050 = vunpack.c.l.s4 1966171168
    %v1051 = vunpack.c.0.s8 %v1050
    %v1052 = vlaneseq
    %v1053 = vshrl.u32 %v1052, 7
    %v1054 = vsub.s32 %v1051, %v1053
    %v1055 = vrot.slane %v1041, %v1054
    %v1056 = vcombine.high %v1048, %v1048
    %v1057 = vcombine.high %v1055, %v1055
    %v1059 = vunpack.c.l.s4 1966171168
    %v1060 = vunpack.c.0.s8 %v1059
    %v1061 = vlaneseq
    %v1062 = vshrl.u32 %v1061, 7
    %v1063 = vsub.s32 %v1060, %v1062
    %v1064 = vrot.slane %v1048, %v1063
    %v1066 = vunpack.c.l.s4 1966171168
    %v1067 = vunpack.c.0.s8 %v1066
    %v1068 = vlaneseq
    %v1069 = vshrl.u32 %v1068, 7
    %v1070 = vsub.s32 %v1067, %v1069
    %v1071 = vrot.slane %v1055, %v1070
    %v1073 = vunpack.c.l.s4 1966171168
    %v1074 = vunpack.c.0.s8 %v1073
    %v1075 = vlaneseq
    %v1076 = vshrl.u32 %v1075, 7
    %v1077 = vsub.s32 %v1074, %v1076
    %v1078 = vrot.slane %v1056, %v1077
    %v1080 = vunpack.c.l.s4 1966171168
    %v1081 = vunpack.c.0.s8 %v1080
    %v1082 = vlaneseq
    %v1083 = vshrl.u32 %v1082, 7
    %v1084 = vsub.s32 %v1081, %v1083
    %v1085 = vrot.slane %v1057, %v1084
    %v1086 = vcombine.high %v1064, %v1064
    %v1087 = vcombine.high %v1071, %v1071
    %v1088 = vcombine.high %v1078, %v1078
    %v1089 = vcombine.high %v1085, %v1085
    %v1090 = vcombine.high %v1036, %v1036
    %v1092 = vunpack.c.l.s4 1966171168
    %v1093 = vunpack.c.0.s8 %v1092
    %v1094 = vlaneseq
    %v1095 = vshrl.u32 %v1094, 7
    %v1096 = vsub.s32 %v1093, %v1095
    %v1097 = vrot.slane %v1036, %v1096
    %v1099 = vunpack.c.l.s4 1966171168
    %v1100 = vunpack.c.0.s8 %v1099
    %v1101 = vlaneseq
    %v1102 = vshrl.u32 %v1101, 7
    %v1103 = vsub.s32 %v1100, %v1102
    %v1104 = vrot.slane %v1090, %v1103
    %v1105 = vcombine.high %v1097, %v1097
    %v1106 = vcombine.high %v1104, %v1104
    %v1108 = vunpack.c.l.s4 1966171168
    %v1109 = vunpack.c.0.s8 %v1108
    %v1110 = vlaneseq
    %v1111 = vshrl.u32 %v1110, 7
    %v1112 = vsub.s32 %v1109, %v1111
    %v1113 = vrot.slane %v1097, %v1112
    %v1115 = vunpack.c.l.s4 1966171168
    %v1116 = vunpack.c.0.s8 %v1115
    %v1117 = vlaneseq
    %v1118 = vshrl.u32 %v1117, 7
    %v1119 = vsub.s32 %v1116, %v1118
    %v1120 = vrot.slane %v1104, %v1119
    %v1122 = vunpack.c.l.s4 1966171168
    %v1123 = vunpack.c.0.s8 %v1122
    %v1124 = vlaneseq
    %v1125 = vshrl.u32 %v1124, 7
    %v1126 = vsub.s32 %v1123, %v1125
    %v1127 = vrot.slane %v1105, %v1126
    %v1129 = vunpack.c.l.s4 1966171168
    %v1130 = vunpack.c.0.s8 %v1129
    %v1131 = vlaneseq
    %v1132 = vshrl.u32 %v1131, 7
    %v1133 = vsub.s32 %v1130, %v1132
    %v1134 = vrot.slane %v1106, %v1133
    %v1135 = vcombine.high %v1113, %v1113
    %v1136 = vcombine.high %v1120, %v1120
    %v1137 = vcombine.high %v1127, %v1127
    %v1138 = vcombine.high %v1134, %v1134
    %v1139 = vlaneseq
    %v1140 = vshrl.u32 %v1139, 7
    %v1141 = vsub.s32 0, %v1140
    %v1142 = vrot.slane %v1064, %v1141
    %v1143 = vlaneseq
    %v1144 = vshrl.u32 %v1143, 7
    %v1145 = vsub.s32 0, %v1144
    %v1146 = vrot.slane %v1078, %v1145
    %v1147 = vlaneseq
    %v1148 = vshrl.u32 %v1147, 7
    %v1149 = vsub.s32 0, %v1148
    %v1150 = vrot.slane %v1086, %v1149
    %v1151 = vlaneseq
    %v1152 = vshrl.u32 %v1151, 7
    %v1153 = vsub.s32 0, %v1152
    %v1154 = vrot.slane %v1088, %v1153
    %v1155 = vlaneseq
    %v1156 = vshrl.u32 %v1155, 7
    %v1157 = vsub.s32 0, %v1156
    %v1158 = vrot.slane %v1071, %v1157
    %v1159 = vlaneseq
    %v1160 = vshrl.u32 %v1159, 7
    %v1161 = vsub.s32 0, %v1160
    %v1162 = vrot.slane %v1085, %v1161
    %v1163 = vlaneseq
    %v1164 = vshrl.u32 %v1163, 7
    %v1165 = vsub.s32 0, %v1164
    %v1166 = vrot.slane %v1087, %v1165
    %v1167 = vlaneseq
    %v1168 = vshrl.u32 %v1167, 7
    %v1169 = vsub.s32 0, %v1168
    %v1170 = vrot.slane %v1089, %v1169
    %v1171 = vlaneseq
    %v1172 = vshrl.u32 %v1171, 7
    %v1173 = vsub.s32 0, %v1172
    %v1174 = vrot.slane %v1113, %v1173
    %v1175 = vlaneseq
    %v1176 = vshrl.u32 %v1175, 7
    %v1177 = vsub.s32 0, %v1176
    %v1178 = vrot.slane %v1127, %v1177
    %v1179 = vlaneseq
    %v1180 = vshrl.u32 %v1179, 7
    %v1181 = vsub.s32 0, %v1180
    %v1182 = vrot.slane %v1135, %v1181
    %v1183 = vlaneseq
    %v1184 = vshrl.u32 %v1183, 7
    %v1185 = vsub.s32 0, %v1184
    %v1186 = vrot.slane %v1137, %v1185
    %v1187 = vlaneseq
    %v1188 = vshrl.u32 %v1187, 7
    %v1189 = vsub.s32 0, %v1188
    %v1190 = vrot.slane %v1120, %v1189
    %v1191 = vlaneseq
    %v1192 = vshrl.u32 %v1191, 7
    %v1193 = vsub.s32 0, %v1192
    %v1194 = vrot.slane %v1134, %v1193
    %v1195 = vlaneseq
    %v1196 = vshrl.u32 %v1195, 7
    %v1197 = vsub.s32 0, %v1196
    %v1198 = vrot.slane %v1136, %v1197
    %v1199 = vlaneseq
    %v1200 = vshrl.u32 %v1199, 7
    %v1201 = vsub.s32 0, %v1200
    %v1202 = vrot.slane %v1138, %v1201
    %1203 = vrot.lane.b32.xlu0 %v1142, 96
    %v1204 = vpop.permute.xlu0 %1203
    %1205 = vrot.lane.b32.xlu0 %v1146, 96
    %v1206 = vpop.permute.xlu0 %1205
    %1207 = vrot.lane.b32.xlu0 %v1150, 96
    %v1208 = vpop.permute.xlu0 %1207
    %1209 = vrot.lane.b32.xlu0 %v1154, 96
    %v1210 = vpop.permute.xlu0 %1209
    %1211 = vrot.lane.b32.xlu0 %v1158, 96
    %v1212 = vpop.permute.xlu0 %1211
    %1213 = vrot.lane.b32.xlu0 %v1162, 96
    %v1214 = vpop.permute.xlu0 %1213
    %1215 = vrot.lane.b32.xlu0 %v1166, 96
    %v1216 = vpop.permute.xlu0 %1215
    %1217 = vrot.lane.b32.xlu0 %v1170, 96
    %v1218 = vpop.permute.xlu0 %1217
    %1219 = vrot.lane.b32.xlu0 %v1174, 96
    %v1220 = vpop.permute.xlu0 %1219
    %1221 = vrot.lane.b32.xlu0 %v1178, 96
    %v1222 = vpop.permute.xlu0 %1221
    %1223 = vrot.lane.b32.xlu0 %v1182, 96
    %v1224 = vpop.permute.xlu0 %1223
    %1225 = vrot.lane.b32.xlu0 %v1186, 96
    %v1226 = vpop.permute.xlu0 %1225
    %1227 = vrot.lane.b32.xlu0 %v1190, 96
    %v1228 = vpop.permute.xlu0 %1227
    %1229 = vrot.lane.b32.xlu0 %v1194, 96
    %v1230 = vpop.permute.xlu0 %1229
    %1231 = vrot.lane.b32.xlu0 %v1198, 96
    %v1232 = vpop.permute.xlu0 %1231
    %1233 = vrot.lane.b32.xlu0 %v1202, 96
    %v1234 = vpop.permute.xlu0 %1233
    %v1251 = vadd.f32 %v1031, %v1204
    %v1252 = vadd.f32 %v1036, %v1204
    %v1253 = vadd.f32 %v1031, %v1206
    %v1254 = vadd.f32 %v1036, %v1206
    %v1255 = vadd.f32 %v1031, %v1208
    %v1256 = vadd.f32 %v1036, %v1208
    %v1257 = vadd.f32 %v1031, %v1210
    %v1258 = vadd.f32 %v1036, %v1210
    %v1259 = vadd.f32 %v1031, %v1212
    %v1260 = vadd.f32 %v1036, %v1212
    %v1261 = vadd.f32 %v1031, %v1214
    %v1262 = vadd.f32 %v1036, %v1214
    %v1263 = vadd.f32 %v1031, %v1216
    %v1264 = vadd.f32 %v1036, %v1216
    %v1265 = vadd.f32 %v1031, %v1218
    %v1266 = vadd.f32 %v1036, %v1218
    %v1267 = vadd.f32 %v1031, %v1220
    %v1268 = vadd.f32 %v1036, %v1220
    %v1269 = vadd.f32 %v1031, %v1222
    %v1270 = vadd.f32 %v1036, %v1222
    %v1271 = vadd.f32 %v1031, %v1224
    %v1272 = vadd.f32 %v1036, %v1224
    %v1273 = vadd.f32 %v1031, %v1226
    %v1274 = vadd.f32 %v1036, %v1226
    %v1275 = vadd.f32 %v1031, %v1228
    %v1276 = vadd.f32 %v1036, %v1228
    %v1277 = vadd.f32 %v1031, %v1230
    %v1278 = vadd.f32 %v1036, %v1230
    %v1279 = vadd.f32 %v1031, %v1232
    %v1280 = vadd.f32 %v1036, %v1232
    %v1281 = vadd.f32 %v1031, %v1234
    %v1282 = vadd.f32 %v1036, %v1234
    %vm1283 = vcmp.gt.f32.partialorder %v1251, 0.0
    %vm1284 = vcmp.gt.f32.partialorder %v1252, 0.0
    %vm1285 = vcmp.gt.f32.partialorder %v1253, 0.0
    %vm1286 = vcmp.gt.f32.partialorder %v1254, 0.0
    %vm1287 = vcmp.gt.f32.partialorder %v1255, 0.0
    %vm1288 = vcmp.gt.f32.partialorder %v1256, 0.0
    %vm1289 = vcmp.gt.f32.partialorder %v1257, 0.0
    %vm1290 = vcmp.gt.f32.partialorder %v1258, 0.0
    %vm1291 = vcmp.gt.f32.partialorder %v1259, 0.0
    %vm1292 = vcmp.gt.f32.partialorder %v1260, 0.0
    %vm1293 = vcmp.gt.f32.partialorder %v1261, 0.0
    %vm1294 = vcmp.gt.f32.partialorder %v1262, 0.0
    %vm1295 = vcmp.gt.f32.partialorder %v1263, 0.0
    %vm1296 = vcmp.gt.f32.partialorder %v1264, 0.0
    %vm1297 = vcmp.gt.f32.partialorder %v1265, 0.0
    %vm1298 = vcmp.gt.f32.partialorder %v1266, 0.0
    %vm1299 = vcmp.gt.f32.partialorder %v1267, 0.0
    %vm1300 = vcmp.gt.f32.partialorder %v1268, 0.0
    %vm1301 = vcmp.gt.f32.partialorder %v1269, 0.0
    %vm1302 = vcmp.gt.f32.partialorder %v1270, 0.0
    %vm1303 = vcmp.gt.f32.partialorder %v1271, 0.0
    %vm1304 = vcmp.gt.f32.partialorder %v1272, 0.0
    %vm1305 = vcmp.gt.f32.partialorder %v1273, 0.0
    %vm1306 = vcmp.gt.f32.partialorder %v1274, 0.0
    %vm1307 = vcmp.gt.f32.partialorder %v1275, 0.0
    %vm1308 = vcmp.gt.f32.partialorder %v1276, 0.0
    %vm1309 = vcmp.gt.f32.partialorder %v1277, 0.0
    %vm1310 = vcmp.gt.f32.partialorder %v1278, 0.0
    %vm1311 = vcmp.gt.f32.partialorder %v1279, 0.0
    %vm1312 = vcmp.gt.f32.partialorder %v1280, 0.0
    %vm1313 = vcmp.gt.f32.partialorder %v1281, 0.0
    %vm1314 = vcmp.gt.f32.partialorder %v1282, 0.0
    %v1315 = vmul.f32 %v1251, 0.2
    %v1316 = vmul.f32 %v1252, 0.2
    %v1317 = vmul.f32 %v1253, 0.2
    %v1318 = vmul.f32 %v1254, 0.2
    %v1319 = vmul.f32 %v1255, 0.2
    %v1320 = vmul.f32 %v1256, 0.2
    %v1321 = vmul.f32 %v1257, 0.2
    %v1322 = vmul.f32 %v1258, 0.2
    %v1323 = vmul.f32 %v1259, 0.2
    %v1324 = vmul.f32 %v1260, 0.2
    %v1325 = vmul.f32 %v1261, 0.2
    %v1326 = vmul.f32 %v1262, 0.2
    %v1327 = vmul.f32 %v1263, 0.2
    %v1328 = vmul.f32 %v1264, 0.2
    %v1329 = vmul.f32 %v1265, 0.2
    %v1330 = vmul.f32 %v1266, 0.2
    %v1331 = vmul.f32 %v1267, 0.2
    %v1332 = vmul.f32 %v1268, 0.2
    %v1333 = vmul.f32 %v1269, 0.2
    %v1334 = vmul.f32 %v1270, 0.2
    %v1335 = vmul.f32 %v1271, 0.2
    %v1336 = vmul.f32 %v1272, 0.2
    %v1337 = vmul.f32 %v1273, 0.2
    %v1338 = vmul.f32 %v1274, 0.2
    %v1339 = vmul.f32 %v1275, 0.2
    %v1340 = vmul.f32 %v1276, 0.2
    %v1341 = vmul.f32 %v1277, 0.2
    %v1342 = vmul.f32 %v1278, 0.2
    %v1343 = vmul.f32 %v1279, 0.2
    %v1344 = vmul.f32 %v1280, 0.2
    %v1345 = vmul.f32 %v1281, 0.2
    %v1346 = vmul.f32 %v1282, 0.2
    %v1347 = vsel %vm1283, %v1251, %v1315
    %v1348 = vsel %vm1284, %v1252, %v1316
    %v1349 = vsel %vm1285, %v1253, %v1317
    %v1350 = vsel %vm1286, %v1254, %v1318
    %v1351 = vsel %vm1287, %v1255, %v1319
    %v1352 = vsel %vm1288, %v1256, %v1320
    %v1353 = vsel %vm1289, %v1257, %v1321
    %v1354 = vsel %vm1290, %v1258, %v1322
    %v1355 = vsel %vm1291, %v1259, %v1323
    %v1356 = vsel %vm1292, %v1260, %v1324
    %v1357 = vsel %vm1293, %v1261, %v1325
    %v1358 = vsel %vm1294, %v1262, %v1326
    %v1359 = vsel %vm1295, %v1263, %v1327
    %v1360 = vsel %vm1296, %v1264, %v1328
    %v1361 = vsel %vm1297, %v1265, %v1329
    %v1362 = vsel %vm1298, %v1266, %v1330
    %v1363 = vsel %vm1299, %v1267, %v1331
    %v1364 = vsel %vm1300, %v1268, %v1332
    %v1365 = vsel %vm1301, %v1269, %v1333
    %v1366 = vsel %vm1302, %v1270, %v1334
    %v1367 = vsel %vm1303, %v1271, %v1335
    %v1368 = vsel %vm1304, %v1272, %v1336
    %v1369 = vsel %vm1305, %v1273, %v1337
    %v1370 = vsel %vm1306, %v1274, %v1338
    %v1371 = vsel %vm1307, %v1275, %v1339
    %v1372 = vsel %vm1308, %v1276, %v1340
    %v1373 = vsel %vm1309, %v1277, %v1341
    %v1374 = vsel %vm1310, %v1278, %v1342
    %v1375 = vsel %vm1311, %v1279, %v1343
    %v1376 = vsel %vm1312, %v1280, %v1344
    %v1377 = vsel %vm1313, %v1281, %v1345
    %v1378 = vsel %vm1314, %v1282, %v1346
    %v1380 = vlaneseq
    %v1381 = vshrl.u32 %v1380, 7
    %v1382 = vsub.s32 0, %v1381
    %v1383 = vrot.slane %v950, %v1382
    %v1385 = vmul.f32 %v1347, %v1383
    %v1386 = vmul.f32 %v1348, %v1383
    %v1387 = vmul.f32 %v1349, %v1383
    %v1388 = vmul.f32 %v1350, %v1383
    %v1389 = vmul.f32 %v1351, %v1383
    %v1390 = vmul.f32 %v1352, %v1383
    %v1391 = vmul.f32 %v1353, %v1383
    %v1392 = vmul.f32 %v1354, %v1383
    %v1393 = vmul.f32 %v1355, %v1383
    %v1394 = vmul.f32 %v1356, %v1383
    %v1395 = vmul.f32 %v1357, %v1383
    %v1396 = vmul.f32 %v1358, %v1383
    %v1397 = vmul.f32 %v1359, %v1383
    %v1398 = vmul.f32 %v1360, %v1383
    %v1399 = vmul.f32 %v1361, %v1383
    %v1400 = vmul.f32 %v1362, %v1383
    %v1401 = vmul.f32 %v1363, %v1383
    %v1402 = vmul.f32 %v1364, %v1383
    %v1403 = vmul.f32 %v1365, %v1383
    %v1404 = vmul.f32 %v1366, %v1383
    %v1405 = vmul.f32 %v1367, %v1383
    %v1406 = vmul.f32 %v1368, %v1383
    %v1407 = vmul.f32 %v1369, %v1383
    %v1408 = vmul.f32 %v1370, %v1383
    %v1409 = vmul.f32 %v1371, %v1383
    %v1410 = vmul.f32 %v1372, %v1383
    %v1411 = vmul.f32 %v1373, %v1383
    %v1412 = vmul.f32 %v1374, %v1383
    %v1413 = vmul.f32 %v1375, %v1383
    %v1414 = vmul.f32 %v1376, %v1383
    %v1415 = vmul.f32 %v1377, %v1383
    %v1416 = vmul.f32 %v1378, %v1383
    %v1417 = vsel %vm525, %v1385, 0.0
    %1418 = vadd.xlane.f32.xlu0 %v1417
    %v1419 = vpop.xlane.xlu0 %1418
    %v1420 = vsel %vm525, %v1386, 0.0
    %1421 = vadd.xlane.f32.xlu0 %v1420
    %v1422 = vpop.xlane.xlu0 %1421
    %v1423 = vsel %vm525, %v1387, 0.0
    %1424 = vadd.xlane.f32.xlu0 %v1423
    %v1425 = vpop.xlane.xlu0 %1424
    %v1426 = vsel %vm525, %v1388, 0.0
    %1427 = vadd.xlane.f32.xlu0 %v1426
    %v1428 = vpop.xlane.xlu0 %1427
    %v1429 = vsel %vm525, %v1389, 0.0
    %1430 = vadd.xlane.f32.xlu0 %v1429
    %v1431 = vpop.xlane.xlu0 %1430
    %v1432 = vsel %vm525, %v1390, 0.0
    %1433 = vadd.xlane.f32.xlu0 %v1432
    %v1434 = vpop.xlane.xlu0 %1433
    %v1435 = vsel %vm525, %v1391, 0.0
    %1436 = vadd.xlane.f32.xlu0 %v1435
    %v1437 = vpop.xlane.xlu0 %1436
    %v1438 = vsel %vm525, %v1392, 0.0
    %1439 = vadd.xlane.f32.xlu0 %v1438
    %v1440 = vpop.xlane.xlu0 %1439
    %v1441 = vsel %vm525, %v1393, 0.0
    %1442 = vadd.xlane.f32.xlu0 %v1441
    %v1443 = vpop.xlane.xlu0 %1442
    %v1444 = vsel %vm525, %v1394, 0.0
    %1445 = vadd.xlane.f32.xlu0 %v1444
    %v1446 = vpop.xlane.xlu0 %1445
    %v1447 = vsel %vm525, %v1395, 0.0
    %1448 = vadd.xlane.f32.xlu0 %v1447
    %v1449 = vpop.xlane.xlu0 %1448
    %v1450 = vsel %vm525, %v1396, 0.0
    %1451 = vadd.xlane.f32.xlu0 %v1450
    %v1452 = vpop.xlane.xlu0 %1451
    %v1453 = vsel %vm525, %v1397, 0.0
    %1454 = vadd.xlane.f32.xlu0 %v1453
    %v1455 = vpop.xlane.xlu0 %1454
    %v1456 = vsel %vm525, %v1398, 0.0
    %1457 = vadd.xlane.f32.xlu0 %v1456
    %v1458 = vpop.xlane.xlu0 %1457
    %v1459 = vsel %vm525, %v1399, 0.0
    %1460 = vadd.xlane.f32.xlu0 %v1459
    %v1461 = vpop.xlane.xlu0 %1460
    %v1462 = vsel %vm525, %v1400, 0.0
    %1463 = vadd.xlane.f32.xlu0 %v1462
    %v1464 = vpop.xlane.xlu0 %1463
    %v1465 = vsel %vm525, %v1401, 0.0
    %1466 = vadd.xlane.f32.xlu0 %v1465
    %v1467 = vpop.xlane.xlu0 %1466
    %v1468 = vsel %vm525, %v1402, 0.0
    %1469 = vadd.xlane.f32.xlu0 %v1468
    %v1470 = vpop.xlane.xlu0 %1469
    %v1471 = vsel %vm525, %v1403, 0.0
    %1472 = vadd.xlane.f32.xlu0 %v1471
    %v1473 = vpop.xlane.xlu0 %1472
    %v1474 = vsel %vm525, %v1404, 0.0
    %1475 = vadd.xlane.f32.xlu0 %v1474
    %v1476 = vpop.xlane.xlu0 %1475
    %v1477 = vsel %vm525, %v1405, 0.0
    %1478 = vadd.xlane.f32.xlu0 %v1477
    %v1479 = vpop.xlane.xlu0 %1478
    %v1480 = vsel %vm525, %v1406, 0.0
    %1481 = vadd.xlane.f32.xlu0 %v1480
    %v1482 = vpop.xlane.xlu0 %1481
    %v1483 = vsel %vm525, %v1407, 0.0
    %1484 = vadd.xlane.f32.xlu0 %v1483
    %v1485 = vpop.xlane.xlu0 %1484
    %v1486 = vsel %vm525, %v1408, 0.0
    %1487 = vadd.xlane.f32.xlu0 %v1486
    %v1488 = vpop.xlane.xlu0 %1487
    %v1489 = vsel %vm525, %v1409, 0.0
    %1490 = vadd.xlane.f32.xlu0 %v1489
    %v1491 = vpop.xlane.xlu0 %1490
    %v1492 = vsel %vm525, %v1410, 0.0
    %1493 = vadd.xlane.f32.xlu0 %v1492
    %v1494 = vpop.xlane.xlu0 %1493
    %v1495 = vsel %vm525, %v1411, 0.0
    %1496 = vadd.xlane.f32.xlu0 %v1495
    %v1497 = vpop.xlane.xlu0 %1496
    %v1498 = vsel %vm525, %v1412, 0.0
    %1499 = vadd.xlane.f32.xlu0 %v1498
    %v1500 = vpop.xlane.xlu0 %1499
    %v1501 = vsel %vm525, %v1413, 0.0
    %1502 = vadd.xlane.f32.xlu0 %v1501
    %v1503 = vpop.xlane.xlu0 %1502
    %v1504 = vsel %vm525, %v1414, 0.0
    %1505 = vadd.xlane.f32.xlu0 %v1504
    %v1506 = vpop.xlane.xlu0 %1505
    %v1507 = vsel %vm525, %v1415, 0.0
    %1508 = vadd.xlane.f32.xlu0 %v1507
    %v1509 = vpop.xlane.xlu0 %1508
    %v1510 = vsel %vm525, %v1416, 0.0
    %1511 = vadd.xlane.f32.xlu0 %v1510
    %v1512 = vpop.xlane.xlu0 %1511
    %v1545 = vlaneseq
    %v1546 = vshrl.u32 %v1545, 7
    %v1547 = vsub.s32 %v657, %v1546
    %v1548 = vrot.slane %v1419, %v1547
    %v1549 = vlaneseq
    %v1550 = vshrl.u32 %v1549, 7
    %v1551 = vsub.s32 %v662, %v1550
    %v1552 = vrot.slane %v1422, %v1551
    %v1553 = vsel %vm667, %v1552, %v1548
    %v1554 = vlaneseq
    %v1555 = vshrl.u32 %v1554, 7
    %v1556 = vsub.s32 %v657, %v1555
    %v1557 = vrot.slane %v1425, %v1556
    %v1558 = vlaneseq
    %v1559 = vshrl.u32 %v1558, 7
    %v1560 = vsub.s32 %v662, %v1559
    %v1561 = vrot.slane %v1428, %v1560
    %v1562 = vsel %vm667, %v1561, %v1557
    %v1563 = vlaneseq
    %v1564 = vshrl.u32 %v1563, 7
    %v1565 = vsub.s32 %v657, %v1564
    %v1566 = vrot.slane %v1431, %v1565
    %v1567 = vlaneseq
    %v1568 = vshrl.u32 %v1567, 7
    %v1569 = vsub.s32 %v662, %v1568
    %v1570 = vrot.slane %v1434, %v1569
    %v1571 = vsel %vm667, %v1570, %v1566
    %v1572 = vlaneseq
    %v1573 = vshrl.u32 %v1572, 7
    %v1574 = vsub.s32 %v657, %v1573
    %v1575 = vrot.slane %v1437, %v1574
    %v1576 = vlaneseq
    %v1577 = vshrl.u32 %v1576, 7
    %v1578 = vsub.s32 %v662, %v1577
    %v1579 = vrot.slane %v1440, %v1578
    %v1580 = vsel %vm667, %v1579, %v1575
    %v1581 = vlaneseq
    %v1582 = vshrl.u32 %v1581, 7
    %v1583 = vsub.s32 %v657, %v1582
    %v1584 = vrot.slane %v1443, %v1583
    %v1585 = vlaneseq
    %v1586 = vshrl.u32 %v1585, 7
    %v1587 = vsub.s32 %v662, %v1586
    %v1588 = vrot.slane %v1446, %v1587
    %v1589 = vsel %vm667, %v1588, %v1584
    %v1590 = vlaneseq
    %v1591 = vshrl.u32 %v1590, 7
    %v1592 = vsub.s32 %v657, %v1591
    %v1593 = vrot.slane %v1449, %v1592
    %v1594 = vlaneseq
    %v1595 = vshrl.u32 %v1594, 7
    %v1596 = vsub.s32 %v662, %v1595
    %v1597 = vrot.slane %v1452, %v1596
    %v1598 = vsel %vm667, %v1597, %v1593
    %v1599 = vlaneseq
    %v1600 = vshrl.u32 %v1599, 7
    %v1601 = vsub.s32 %v657, %v1600
    %v1602 = vrot.slane %v1455, %v1601
    %v1603 = vlaneseq
    %v1604 = vshrl.u32 %v1603, 7
    %v1605 = vsub.s32 %v662, %v1604
    %v1606 = vrot.slane %v1458, %v1605
    %v1607 = vsel %vm667, %v1606, %v1602
    %v1608 = vlaneseq
    %v1609 = vshrl.u32 %v1608, 7
    %v1610 = vsub.s32 %v657, %v1609
    %v1611 = vrot.slane %v1461, %v1610
    %v1612 = vlaneseq
    %v1613 = vshrl.u32 %v1612, 7
    %v1614 = vsub.s32 %v662, %v1613
    %v1615 = vrot.slane %v1464, %v1614
    %v1616 = vsel %vm667, %v1615, %v1611
    %v1617 = vlaneseq
    %v1618 = vshrl.u32 %v1617, 7
    %v1619 = vsub.s32 %v657, %v1618
    %v1620 = vrot.slane %v1467, %v1619
    %v1621 = vlaneseq
    %v1622 = vshrl.u32 %v1621, 7
    %v1623 = vsub.s32 %v662, %v1622
    %v1624 = vrot.slane %v1470, %v1623
    %v1625 = vsel %vm667, %v1624, %v1620
    %v1626 = vlaneseq
    %v1627 = vshrl.u32 %v1626, 7
    %v1628 = vsub.s32 %v657, %v1627
    %v1629 = vrot.slane %v1473, %v1628
    %v1630 = vlaneseq
    %v1631 = vshrl.u32 %v1630, 7
    %v1632 = vsub.s32 %v662, %v1631
    %v1633 = vrot.slane %v1476, %v1632
    %v1634 = vsel %vm667, %v1633, %v1629
    %v1635 = vlaneseq
    %v1636 = vshrl.u32 %v1635, 7
    %v1637 = vsub.s32 %v657, %v1636
    %v1638 = vrot.slane %v1479, %v1637
    %v1639 = vlaneseq
    %v1640 = vshrl.u32 %v1639, 7
    %v1641 = vsub.s32 %v662, %v1640
    %v1642 = vrot.slane %v1482, %v1641
    %v1643 = vsel %vm667, %v1642, %v1638
    %v1644 = vlaneseq
    %v1645 = vshrl.u32 %v1644, 7
    %v1646 = vsub.s32 %v657, %v1645
    %v1647 = vrot.slane %v1485, %v1646
    %v1648 = vlaneseq
    %v1649 = vshrl.u32 %v1648, 7
    %v1650 = vsub.s32 %v662, %v1649
    %v1651 = vrot.slane %v1488, %v1650
    %v1652 = vsel %vm667, %v1651, %v1647
    %v1653 = vlaneseq
    %v1654 = vshrl.u32 %v1653, 7
    %v1655 = vsub.s32 %v657, %v1654
    %v1656 = vrot.slane %v1491, %v1655
    %v1657 = vlaneseq
    %v1658 = vshrl.u32 %v1657, 7
    %v1659 = vsub.s32 %v662, %v1658
    %v1660 = vrot.slane %v1494, %v1659
    %v1661 = vsel %vm667, %v1660, %v1656
    %v1662 = vlaneseq
    %v1663 = vshrl.u32 %v1662, 7
    %v1664 = vsub.s32 %v657, %v1663
    %v1665 = vrot.slane %v1497, %v1664
    %v1666 = vlaneseq
    %v1667 = vshrl.u32 %v1666, 7
    %v1668 = vsub.s32 %v662, %v1667
    %v1669 = vrot.slane %v1500, %v1668
    %v1670 = vsel %vm667, %v1669, %v1665
    %v1671 = vlaneseq
    %v1672 = vshrl.u32 %v1671, 7
    %v1673 = vsub.s32 %v657, %v1672
    %v1674 = vrot.slane %v1503, %v1673
    %v1675 = vlaneseq
    %v1676 = vshrl.u32 %v1675, 7
    %v1677 = vsub.s32 %v662, %v1676
    %v1678 = vrot.slane %v1506, %v1677
    %v1679 = vsel %vm667, %v1678, %v1674
    %v1680 = vlaneseq
    %v1681 = vshrl.u32 %v1680, 7
    %v1682 = vsub.s32 %v657, %v1681
    %v1683 = vrot.slane %v1509, %v1682
    %v1684 = vlaneseq
    %v1685 = vshrl.u32 %v1684, 7
    %v1686 = vsub.s32 %v662, %v1685
    %v1687 = vrot.slane %v1512, %v1686
    %v1688 = vsel %vm667, %v1687, %v1683
    %v1689 = vsel %vm804, %v1562, %v1553
    %v1690 = vsel %vm806, %v1571, %v1689
    %v1691 = vsel %vm808, %v1580, %v1690
    %v1692 = vsel %vm810, %v1589, %v1691
    %v1693 = vsel %vm812, %v1598, %v1692
    %v1694 = vsel %vm814, %v1607, %v1693
    %v1695 = vsel %vm816, %v1616, %v1694
    %v1696 = vsel %vm804, %v1634, %v1625
    %v1697 = vsel %vm806, %v1643, %v1696
    %v1698 = vsel %vm808, %v1652, %v1697
    %v1699 = vsel %vm810, %v1661, %v1698
    %v1700 = vsel %vm812, %v1670, %v1699
    %v1701 = vsel %vm814, %v1679, %v1700
    %v1702 = vsel %vm816, %v1688, %v1701
    %v1705 = vsel %vm622, %v1695, -1e+30
    %v1706 = vsel %vm623, %v1702, -1e+30
    %v1707 = vsel %vm829, %v1705, -inf
    %1708 = vmax.xlane.f32.xlu0 %v1707
    %v1709 = vpop.xlane.xlu0 %1708
    %v1710 = vsel %vm829, %v1706, -inf
    %1711 = vmax.xlane.f32.xlu0 %v1710
    %v1712 = vpop.xlane.xlu0 %1711
    %v1713 = vsub.f32 %v1705, %v1709
    %v1714 = vsub.f32 %v1706, %v1712
    %v1715 = vmul.f32 %v1713, 1.442695
    %v1716 = vpow.pop %v1715
    %v1717 = vmul.f32 %v1714, 1.442695
    %v1718 = vpow.pop %v1717
    %v1719 = vsel %vm829, %v1716, 0.0
    %1720 = vadd.xlane.f32.xlu0 %v1719
    %v1721 = vpop.xlane.xlu0 %1720
    %v1722 = vsel %vm829, %v1718, 0.0
    %1723 = vadd.xlane.f32.xlu0 %v1722
    %v1724 = vpop.xlane.xlu0 %1723
    %v1725 = vmax.f32 %v1721, 1e-30
    %v1726 = vmax.f32 %v1724, 1e-30
    %v1728 = vsel %vm829, %v1716, 0
    %v1731 = vsel %vm829, %v1718, 0
    %1733 = vmatprep.subr.mxu0 0.0
    %1734 = vmatpush1.msra.mxu0 %v1031
    %1735 = vmatprep.subr.mxu0 0.0
    %1736 = vmatpush1.msra.mxu0 %v1036
    %1737 = vmatprep.subr.mxu0 0.0
    %1738 = vmatpush1.msra.mxu0 0.0
    %1739 = vmatprep.subr.mxu0 0.0
    %1740 = vmatpush1.msra.mxu0 0.0
    %1741 = vmatprep.subr.mxu0 0.0
    %1742 = vmatpush1.msra.mxu0 0.0
    %1743 = vmatprep.subr.mxu0 0.0
    %1744 = vmatpush1.msra.mxu0 0.0
    %1745 = vmatprep.subr.mxu0 0.0
    %1746 = vmatpush1.msra.mxu0 0.0
    %1747 = vmatprep.subr.mxu0 0.0
    %1748 = vmatpush1.msra.mxu0 0.0
    %1749 = vmatprep.subr.mxu0 0.0
    %1750 = vmatpush1.msra.mxu0 0.0
    %1751 = vmatprep.subr.mxu0 0.0
    %1752 = vmatpush1.msra.mxu0 0.0
    %1753 = vmatprep.subr.mxu0 0.0
    %1754 = vmatpush1.msra.mxu0 0.0
    %1755 = vmatprep.subr.mxu0 0.0
    %1756 = vmatpush1.msra.mxu0 0.0
    %1757 = vmatprep.subr.mxu0 0.0
    %1758 = vmatpush1.msra.mxu0 0.0
    %1759 = vmatprep.subr.mxu0 0.0
    %1760 = vmatpush1.msra.mxu0 0.0
    %1761 = vmatprep.subr.mxu0 0.0
    %1762 = vmatpush1.msra.mxu0 0.0
    %1763 = vmatprep.subr.mxu0 0.0
    %1764 = vmatpush1.msra.mxu0 0.0
    %1765 = vmatprep.subr.mxu0 0.0
    %1766 = vmatpush1.msra.mxu0 0.0
    %1767 = vmatprep.subr.mxu0 0.0
    %1768 = vmatpush1.msra.mxu0 0.0
    %1769 = vmatprep.subr.mxu0 0.0
    %1770 = vmatpush1.msra.mxu0 0.0
    %1771 = vmatprep.subr.mxu0 0.0
    %1772 = vmatpush1.msra.mxu0 0.0
    %1773 = vmatprep.subr.mxu0 0.0
    %1774 = vmatpush1.msra.mxu0 0.0
    %1775 = vmatprep.subr.mxu0 0.0
    %1776 = vmatpush1.msra.mxu0 0.0
    %1777 = vmatprep.subr.mxu0 0.0
    %1778 = vmatpush1.msra.mxu0 0.0
    %1779 = vmatprep.subr.mxu0 0.0
    %1780 = vmatpush1.msra.mxu0 0.0
    %1781 = vmatprep.subr.mxu0 0.0
    %1782 = vmatpush1.msra.mxu0 0.0
    %1783 = vmatprep.subr.mxu0 0.0
    %1784 = vmatpush1.msra.mxu0 0.0
    %1785 = vmatprep.subr.mxu0 0.0
    %1786 = vmatpush1.msra.mxu0 0.0
    %1787 = vmatprep.subr.mxu0 0.0
    %1788 = vmatpush1.msra.mxu0 0.0
    %1789 = vmatprep.subr.mxu0 0.0
    %1790 = vmatpush1.msra.mxu0 0.0
    %1791 = vmatprep.subr.mxu0 0.0
    %1792 = vmatpush1.msra.mxu0 0.0
    %1793 = vmatprep.subr.mxu0 0.0
    %1794 = vmatpush1.msra.mxu0 0.0
    %1795 = vmatprep.subr.mxu0 0.0
    %1796 = vmatpush1.msra.mxu0 0.0
    %1797 = vmatprep.mubr.f32.mxu0 0.0
    %1798 = vmatmul.mubr.f32.gmra.mrb[0].mxu0 %v1728
    %v1799 = vpop.f32.mrb[0].mxu0
    %v1800 = vadd.f32 0.0, %v1799
    %v1801 = vpop.f32.mrb[0].mxu0
    %1802 = vmatprep.mubr.f32.mxu0 0.0
    %1803 = vmatmul.mubr.f32.gmra.mrb[0].mxu0 %v1731
    %v1804 = vpop.f32.mrb[0].mxu0
    %v1805 = vadd.f32 0.0, %v1804
    %v1806 = vpop.f32.mrb[0].mxu0
    %1807 = vdwg.mxu0
    %v1808 = vrcp.pop %v1725
    %v1809 = vrcp.pop %v1726
    %v1810 = vmul.f32 %v1800, %v1808
    %v1811 = vmul.f32 %v1805, %v1809
    %v1813 = vlaneseq
    %v1814 = vshrl.u32 %v1813, 7
    %v1815 = vsub.s32 0, %v1814
    %v1816 = vrot.slane %v951, %v1815
    %v1818 = vadd.f32 %v1810, %v1816
    %v1819 = vadd.f32 %v1811, %v1816
    %v1820 = vmax.f32 %v1818, 0.0
    %v1821 = vmax.f32 %v1819, 0.0
    %v1822 = vld [vmem:[%s11] sm:$0xff]
    %v1823 = vld [vmem:[%s11 + $0x8] sm:$0xff]
    %v1824 = vld [vmem:[%s11 + $0x10] sm:$0xff]
    %v1825 = vld [vmem:[%s11 + $0x18] sm:$0xff]
    %v1826 = vld [vmem:[%s12] sm:$0x1]
    %v1827 = vld [vmem:[%s13] sm:$0x1]
    %v1828 = vld [vmem:[%s14] sm:$0x1]
    %v1830 = vlaneseq
    %v1831 = vshrl.u32 %v1830, 7
    %v1832 = vsub.s32 0, %v1831
    %v1833 = vrot.slane %v1826, %v1832
    %v1836 = vsel %vm525, %v1820, 0
    %v1839 = vsel %vm525, %v1821, 0
    %1841 = vmatprep.subr.mxu0 0.0
    %1842 = vmatpush1.msra.mxu0 %v1822
    %1843 = vmatprep.subr.mxu0 0.0
    %1844 = vmatpush1.msra.mxu0 %v1823
    %1845 = vmatprep.subr.mxu0 0.0
    %1846 = vmatpush1.msra.mxu0 %v1824
    %1847 = vmatprep.subr.mxu0 0.0
    %1848 = vmatpush1.msra.mxu0 %v1825
    %1849 = vmatprep.subr.mxu0 0.0
    %1850 = vmatpush1.msra.mxu0 0.0
    %1851 = vmatprep.subr.mxu0 0.0
    %1852 = vmatpush1.msra.mxu0 0.0
    %1853 = vmatprep.subr.mxu0 0.0
    %1854 = vmatpush1.msra.mxu0 0.0
    %1855 = vmatprep.subr.mxu0 0.0
    %1856 = vmatpush1.msra.mxu0 0.0
    %1857 = vmatprep.subr.mxu0 0.0
    %1858 = vmatpush1.msra.mxu0 0.0
    %1859 = vmatprep.subr.mxu0 0.0
    %1860 = vmatpush1.msra.mxu0 0.0
    %1861 = vmatprep.subr.mxu0 0.0
    %1862 = vmatpush1.msra.mxu0 0.0
    %1863 = vmatprep.subr.mxu0 0.0
    %1864 = vmatpush1.msra.mxu0 0.0
    %1865 = vmatprep.subr.mxu0 0.0
    %1866 = vmatpush1.msra.mxu0 0.0
    %1867 = vmatprep.subr.mxu0 0.0
    %1868 = vmatpush1.msra.mxu0 0.0
    %1869 = vmatprep.subr.mxu0 0.0
    %1870 = vmatpush1.msra.mxu0 0.0
    %1871 = vmatprep.subr.mxu0 0.0
    %1872 = vmatpush1.msra.mxu0 0.0
    %1873 = vmatprep.subr.mxu0 0.0
    %1874 = vmatpush1.msra.mxu0 0.0
    %1875 = vmatprep.subr.mxu0 0.0
    %1876 = vmatpush1.msra.mxu0 0.0
    %1877 = vmatprep.subr.mxu0 0.0
    %1878 = vmatpush1.msra.mxu0 0.0
    %1879 = vmatprep.subr.mxu0 0.0
    %1880 = vmatpush1.msra.mxu0 0.0
    %1881 = vmatprep.subr.mxu0 0.0
    %1882 = vmatpush1.msra.mxu0 0.0
    %1883 = vmatprep.subr.mxu0 0.0
    %1884 = vmatpush1.msra.mxu0 0.0
    %1885 = vmatprep.subr.mxu0 0.0
    %1886 = vmatpush1.msra.mxu0 0.0
    %1887 = vmatprep.subr.mxu0 0.0
    %1888 = vmatpush1.msra.mxu0 0.0
    %1889 = vmatprep.subr.mxu0 0.0
    %1890 = vmatpush1.msra.mxu0 0.0
    %1891 = vmatprep.subr.mxu0 0.0
    %1892 = vmatpush1.msra.mxu0 0.0
    %1893 = vmatprep.subr.mxu0 0.0
    %1894 = vmatpush1.msra.mxu0 0.0
    %1895 = vmatprep.subr.mxu0 0.0
    %1896 = vmatpush1.msra.mxu0 0.0
    %1897 = vmatprep.subr.mxu0 0.0
    %1898 = vmatpush1.msra.mxu0 0.0
    %1899 = vmatprep.subr.mxu0 0.0
    %1900 = vmatpush1.msra.mxu0 0.0
    %1901 = vmatprep.subr.mxu0 0.0
    %1902 = vmatpush1.msra.mxu0 0.0
    %1903 = vmatprep.subr.mxu0 0.0
    %1904 = vmatpush1.msra.mxu0 0.0
    %1905 = vmatprep.mubr.f32.mxu0 0.0
    %1906 = vmatmul.mubr.f32.gmra.mrb[0].mxu0 %v1836
    %v1907 = vpop.f32.mrb[0].mxu0
    %v1908 = vadd.f32 %v1833, %v1907
    %v1909 = vpop.f32.mrb[0].mxu0
    %1910 = vmatprep.mubr.f32.mxu0 0.0
    %1911 = vmatmul.mubr.f32.gmra.mrb[0].mxu0 %v1839
    %v1912 = vpop.f32.mrb[0].mxu0
    %v1913 = vadd.f32 %v1833, %v1912
    %v1914 = vpop.f32.mrb[0].mxu0
    %1915 = vdwg.mxu0
    %v1918 = vcombine.high %v1908, %v1908
    %v1920 = vunpack.c.l.s4 1966171168
    %v1921 = vunpack.c.0.s8 %v1920
    %v1922 = vlaneseq
    %v1923 = vshrl.u32 %v1922, 7
    %v1924 = vsub.s32 %v1921, %v1923
    %v1925 = vrot.slane %v1908, %v1924
    %v1927 = vunpack.c.l.s4 1966171168
    %v1928 = vunpack.c.0.s8 %v1927
    %v1929 = vlaneseq
    %v1930 = vshrl.u32 %v1929, 7
    %v1931 = vsub.s32 %v1928, %v1930
    %v1932 = vrot.slane %v1918, %v1931
    %v1933 = vcombine.high %v1925, %v1925
    %v1934 = vcombine.high %v1932, %v1932
    %v1936 = vunpack.c.l.s4 1966171168
    %v1937 = vunpack.c.0.s8 %v1936
    %v1938 = vlaneseq
    %v1939 = vshrl.u32 %v1938, 7
    %v1940 = vsub.s32 %v1937, %v1939
    %v1941 = vrot.slane %v1925, %v1940
    %v1943 = vunpack.c.l.s4 1966171168
    %v1944 = vunpack.c.0.s8 %v1943
    %v1945 = vlaneseq
    %v1946 = vshrl.u32 %v1945, 7
    %v1947 = vsub.s32 %v1944, %v1946
    %v1948 = vrot.slane %v1932, %v1947
    %v1950 = vunpack.c.l.s4 1966171168
    %v1951 = vunpack.c.0.s8 %v1950
    %v1952 = vlaneseq
    %v1953 = vshrl.u32 %v1952, 7
    %v1954 = vsub.s32 %v1951, %v1953
    %v1955 = vrot.slane %v1933, %v1954
    %v1957 = vunpack.c.l.s4 1966171168
    %v1958 = vunpack.c.0.s8 %v1957
    %v1959 = vlaneseq
    %v1960 = vshrl.u32 %v1959, 7
    %v1961 = vsub.s32 %v1958, %v1960
    %v1962 = vrot.slane %v1934, %v1961
    %v1963 = vcombine.high %v1941, %v1941
    %v1964 = vcombine.high %v1948, %v1948
    %v1965 = vcombine.high %v1955, %v1955
    %v1966 = vcombine.high %v1962, %v1962
    %v1967 = vcombine.high %v1913, %v1913
    %v1969 = vunpack.c.l.s4 1966171168
    %v1970 = vunpack.c.0.s8 %v1969
    %v1971 = vlaneseq
    %v1972 = vshrl.u32 %v1971, 7
    %v1973 = vsub.s32 %v1970, %v1972
    %v1974 = vrot.slane %v1913, %v1973
    %v1976 = vunpack.c.l.s4 1966171168
    %v1977 = vunpack.c.0.s8 %v1976
    %v1978 = vlaneseq
    %v1979 = vshrl.u32 %v1978, 7
    %v1980 = vsub.s32 %v1977, %v1979
    %v1981 = vrot.slane %v1967, %v1980
    %v1982 = vcombine.high %v1974, %v1974
    %v1983 = vcombine.high %v1981, %v1981
    %v1985 = vunpack.c.l.s4 1966171168
    %v1986 = vunpack.c.0.s8 %v1985
    %v1987 = vlaneseq
    %v1988 = vshrl.u32 %v1987, 7
    %v1989 = vsub.s32 %v1986, %v1988
    %v1990 = vrot.slane %v1974, %v1989
    %v1992 = vunpack.c.l.s4 1966171168
    %v1993 = vunpack.c.0.s8 %v1992
    %v1994 = vlaneseq
    %v1995 = vshrl.u32 %v1994, 7
    %v1996 = vsub.s32 %v1993, %v1995
    %v1997 = vrot.slane %v1981, %v1996
    %v1999 = vunpack.c.l.s4 1966171168
    %v2000 = vunpack.c.0.s8 %v1999
    %v2001 = vlaneseq
    %v2002 = vshrl.u32 %v2001, 7
    %v2003 = vsub.s32 %v2000, %v2002
    %v2004 = vrot.slane %v1982, %v2003
    %v2006 = vunpack.c.l.s4 1966171168
    %v2007 = vunpack.c.0.s8 %v2006
    %v2008 = vlaneseq
    %v2009 = vshrl.u32 %v2008, 7
    %v2010 = vsub.s32 %v2007, %v2009
    %v2011 = vrot.slane %v1983, %v2010
    %v2012 = vcombine.high %v1990, %v1990
    %v2013 = vcombine.high %v1997, %v1997
    %v2014 = vcombine.high %v2004, %v2004
    %v2015 = vcombine.high %v2011, %v2011
    %v2016 = vlaneseq
    %v2017 = vshrl.u32 %v2016, 7
    %v2018 = vsub.s32 0, %v2017
    %v2019 = vrot.slane %v1941, %v2018
    %v2020 = vlaneseq
    %v2021 = vshrl.u32 %v2020, 7
    %v2022 = vsub.s32 0, %v2021
    %v2023 = vrot.slane %v1955, %v2022
    %v2024 = vlaneseq
    %v2025 = vshrl.u32 %v2024, 7
    %v2026 = vsub.s32 0, %v2025
    %v2027 = vrot.slane %v1963, %v2026
    %v2028 = vlaneseq
    %v2029 = vshrl.u32 %v2028, 7
    %v2030 = vsub.s32 0, %v2029
    %v2031 = vrot.slane %v1965, %v2030
    %v2032 = vlaneseq
    %v2033 = vshrl.u32 %v2032, 7
    %v2034 = vsub.s32 0, %v2033
    %v2035 = vrot.slane %v1948, %v2034
    %v2036 = vlaneseq
    %v2037 = vshrl.u32 %v2036, 7
    %v2038 = vsub.s32 0, %v2037
    %v2039 = vrot.slane %v1962, %v2038
    %v2040 = vlaneseq
    %v2041 = vshrl.u32 %v2040, 7
    %v2042 = vsub.s32 0, %v2041
    %v2043 = vrot.slane %v1964, %v2042
    %v2044 = vlaneseq
    %v2045 = vshrl.u32 %v2044, 7
    %v2046 = vsub.s32 0, %v2045
    %v2047 = vrot.slane %v1966, %v2046
    %v2048 = vlaneseq
    %v2049 = vshrl.u32 %v2048, 7
    %v2050 = vsub.s32 0, %v2049
    %v2051 = vrot.slane %v1990, %v2050
    %v2052 = vlaneseq
    %v2053 = vshrl.u32 %v2052, 7
    %v2054 = vsub.s32 0, %v2053
    %v2055 = vrot.slane %v2004, %v2054
    %v2056 = vlaneseq
    %v2057 = vshrl.u32 %v2056, 7
    %v2058 = vsub.s32 0, %v2057
    %v2059 = vrot.slane %v2012, %v2058
    %v2060 = vlaneseq
    %v2061 = vshrl.u32 %v2060, 7
    %v2062 = vsub.s32 0, %v2061
    %v2063 = vrot.slane %v2014, %v2062
    %v2064 = vlaneseq
    %v2065 = vshrl.u32 %v2064, 7
    %v2066 = vsub.s32 0, %v2065
    %v2067 = vrot.slane %v1997, %v2066
    %v2068 = vlaneseq
    %v2069 = vshrl.u32 %v2068, 7
    %v2070 = vsub.s32 0, %v2069
    %v2071 = vrot.slane %v2011, %v2070
    %v2072 = vlaneseq
    %v2073 = vshrl.u32 %v2072, 7
    %v2074 = vsub.s32 0, %v2073
    %v2075 = vrot.slane %v2013, %v2074
    %v2076 = vlaneseq
    %v2077 = vshrl.u32 %v2076, 7
    %v2078 = vsub.s32 0, %v2077
    %v2079 = vrot.slane %v2015, %v2078
    %2080 = vrot.lane.b32.xlu0 %v2019, 120
    %v2081 = vpop.permute.xlu0 %2080
    %2082 = vrot.lane.b32.xlu0 %v2023, 120
    %v2083 = vpop.permute.xlu0 %2082
    %2084 = vrot.lane.b32.xlu0 %v2027, 120
    %v2085 = vpop.permute.xlu0 %2084
    %2086 = vrot.lane.b32.xlu0 %v2031, 120
    %v2087 = vpop.permute.xlu0 %2086
    %2088 = vrot.lane.b32.xlu0 %v2035, 120
    %v2089 = vpop.permute.xlu0 %2088
    %2090 = vrot.lane.b32.xlu0 %v2039, 120
    %v2091 = vpop.permute.xlu0 %2090
    %2092 = vrot.lane.b32.xlu0 %v2043, 120
    %v2093 = vpop.permute.xlu0 %2092
    %2094 = vrot.lane.b32.xlu0 %v2047, 120
    %v2095 = vpop.permute.xlu0 %2094
    %2096 = vrot.lane.b32.xlu0 %v2051, 120
    %v2097 = vpop.permute.xlu0 %2096
    %2098 = vrot.lane.b32.xlu0 %v2055, 120
    %v2099 = vpop.permute.xlu0 %2098
    %2100 = vrot.lane.b32.xlu0 %v2059, 120
    %v2101 = vpop.permute.xlu0 %2100
    %2102 = vrot.lane.b32.xlu0 %v2063, 120
    %v2103 = vpop.permute.xlu0 %2102
    %2104 = vrot.lane.b32.xlu0 %v2067, 120
    %v2105 = vpop.permute.xlu0 %2104
    %2106 = vrot.lane.b32.xlu0 %v2071, 120
    %v2107 = vpop.permute.xlu0 %2106
    %2108 = vrot.lane.b32.xlu0 %v2075, 120
    %v2109 = vpop.permute.xlu0 %2108
    %2110 = vrot.lane.b32.xlu0 %v2079, 120
    %v2111 = vpop.permute.xlu0 %2110
    %v2128 = vadd.f32 %v1908, %v2081
    %v2129 = vadd.f32 %v1913, %v2081
    %v2130 = vadd.f32 %v1908, %v2083
    %v2131 = vadd.f32 %v1913, %v2083
    %v2132 = vadd.f32 %v1908, %v2085
    %v2133 = vadd.f32 %v1913, %v2085
    %v2134 = vadd.f32 %v1908, %v2087
    %v2135 = vadd.f32 %v1913, %v2087
    %v2136 = vadd.f32 %v1908, %v2089
    %v2137 = vadd.f32 %v1913, %v2089
    %v2138 = vadd.f32 %v1908, %v2091
    %v2139 = vadd.f32 %v1913, %v2091
    %v2140 = vadd.f32 %v1908, %v2093
    %v2141 = vadd.f32 %v1913, %v2093
    %v2142 = vadd.f32 %v1908, %v2095
    %v2143 = vadd.f32 %v1913, %v2095
    %v2144 = vadd.f32 %v1908, %v2097
    %v2145 = vadd.f32 %v1913, %v2097
    %v2146 = vadd.f32 %v1908, %v2099
    %v2147 = vadd.f32 %v1913, %v2099
    %v2148 = vadd.f32 %v1908, %v2101
    %v2149 = vadd.f32 %v1913, %v2101
    %v2150 = vadd.f32 %v1908, %v2103
    %v2151 = vadd.f32 %v1913, %v2103
    %v2152 = vadd.f32 %v1908, %v2105
    %v2153 = vadd.f32 %v1913, %v2105
    %v2154 = vadd.f32 %v1908, %v2107
    %v2155 = vadd.f32 %v1913, %v2107
    %v2156 = vadd.f32 %v1908, %v2109
    %v2157 = vadd.f32 %v1913, %v2109
    %v2158 = vadd.f32 %v1908, %v2111
    %v2159 = vadd.f32 %v1913, %v2111
    %vm2160 = vcmp.gt.f32.partialorder %v2128, 0.0
    %vm2161 = vcmp.gt.f32.partialorder %v2129, 0.0
    %vm2162 = vcmp.gt.f32.partialorder %v2130, 0.0
    %vm2163 = vcmp.gt.f32.partialorder %v2131, 0.0
    %vm2164 = vcmp.gt.f32.partialorder %v2132, 0.0
    %vm2165 = vcmp.gt.f32.partialorder %v2133, 0.0
    %vm2166 = vcmp.gt.f32.partialorder %v2134, 0.0
    %vm2167 = vcmp.gt.f32.partialorder %v2135, 0.0
    %vm2168 = vcmp.gt.f32.partialorder %v2136, 0.0
    %vm2169 = vcmp.gt.f32.partialorder %v2137, 0.0
    %vm2170 = vcmp.gt.f32.partialorder %v2138, 0.0
    %vm2171 = vcmp.gt.f32.partialorder %v2139, 0.0
    %vm2172 = vcmp.gt.f32.partialorder %v2140, 0.0
    %vm2173 = vcmp.gt.f32.partialorder %v2141, 0.0
    %vm2174 = vcmp.gt.f32.partialorder %v2142, 0.0
    %vm2175 = vcmp.gt.f32.partialorder %v2143, 0.0
    %vm2176 = vcmp.gt.f32.partialorder %v2144, 0.0
    %vm2177 = vcmp.gt.f32.partialorder %v2145, 0.0
    %vm2178 = vcmp.gt.f32.partialorder %v2146, 0.0
    %vm2179 = vcmp.gt.f32.partialorder %v2147, 0.0
    %vm2180 = vcmp.gt.f32.partialorder %v2148, 0.0
    %vm2181 = vcmp.gt.f32.partialorder %v2149, 0.0
    %vm2182 = vcmp.gt.f32.partialorder %v2150, 0.0
    %vm2183 = vcmp.gt.f32.partialorder %v2151, 0.0
    %vm2184 = vcmp.gt.f32.partialorder %v2152, 0.0
    %vm2185 = vcmp.gt.f32.partialorder %v2153, 0.0
    %vm2186 = vcmp.gt.f32.partialorder %v2154, 0.0
    %vm2187 = vcmp.gt.f32.partialorder %v2155, 0.0
    %vm2188 = vcmp.gt.f32.partialorder %v2156, 0.0
    %vm2189 = vcmp.gt.f32.partialorder %v2157, 0.0
    %vm2190 = vcmp.gt.f32.partialorder %v2158, 0.0
    %vm2191 = vcmp.gt.f32.partialorder %v2159, 0.0
    %v2192 = vmul.f32 %v2128, 0.2
    %v2193 = vmul.f32 %v2129, 0.2
    %v2194 = vmul.f32 %v2130, 0.2
    %v2195 = vmul.f32 %v2131, 0.2
    %v2196 = vmul.f32 %v2132, 0.2
    %v2197 = vmul.f32 %v2133, 0.2
    %v2198 = vmul.f32 %v2134, 0.2
    %v2199 = vmul.f32 %v2135, 0.2
    %v2200 = vmul.f32 %v2136, 0.2
    %v2201 = vmul.f32 %v2137, 0.2
    %v2202 = vmul.f32 %v2138, 0.2
    %v2203 = vmul.f32 %v2139, 0.2
    %v2204 = vmul.f32 %v2140, 0.2
    %v2205 = vmul.f32 %v2141, 0.2
    %v2206 = vmul.f32 %v2142, 0.2
    %v2207 = vmul.f32 %v2143, 0.2
    %v2208 = vmul.f32 %v2144, 0.2
    %v2209 = vmul.f32 %v2145, 0.2
    %v2210 = vmul.f32 %v2146, 0.2
    %v2211 = vmul.f32 %v2147, 0.2
    %v2212 = vmul.f32 %v2148, 0.2
    %v2213 = vmul.f32 %v2149, 0.2
    %v2214 = vmul.f32 %v2150, 0.2
    %v2215 = vmul.f32 %v2151, 0.2
    %v2216 = vmul.f32 %v2152, 0.2
    %v2217 = vmul.f32 %v2153, 0.2
    %v2218 = vmul.f32 %v2154, 0.2
    %v2219 = vmul.f32 %v2155, 0.2
    %v2220 = vmul.f32 %v2156, 0.2
    %v2221 = vmul.f32 %v2157, 0.2
    %v2222 = vmul.f32 %v2158, 0.2
    %v2223 = vmul.f32 %v2159, 0.2
    %v2224 = vsel %vm2160, %v2128, %v2192
    %v2225 = vsel %vm2161, %v2129, %v2193
    %v2226 = vsel %vm2162, %v2130, %v2194
    %v2227 = vsel %vm2163, %v2131, %v2195
    %v2228 = vsel %vm2164, %v2132, %v2196
    %v2229 = vsel %vm2165, %v2133, %v2197
    %v2230 = vsel %vm2166, %v2134, %v2198
    %v2231 = vsel %vm2167, %v2135, %v2199
    %v2232 = vsel %vm2168, %v2136, %v2200
    %v2233 = vsel %vm2169, %v2137, %v2201
    %v2234 = vsel %vm2170, %v2138, %v2202
    %v2235 = vsel %vm2171, %v2139, %v2203
    %v2236 = vsel %vm2172, %v2140, %v2204
    %v2237 = vsel %vm2173, %v2141, %v2205
    %v2238 = vsel %vm2174, %v2142, %v2206
    %v2239 = vsel %vm2175, %v2143, %v2207
    %v2240 = vsel %vm2176, %v2144, %v2208
    %v2241 = vsel %vm2177, %v2145, %v2209
    %v2242 = vsel %vm2178, %v2146, %v2210
    %v2243 = vsel %vm2179, %v2147, %v2211
    %v2244 = vsel %vm2180, %v2148, %v2212
    %v2245 = vsel %vm2181, %v2149, %v2213
    %v2246 = vsel %vm2182, %v2150, %v2214
    %v2247 = vsel %vm2183, %v2151, %v2215
    %v2248 = vsel %vm2184, %v2152, %v2216
    %v2249 = vsel %vm2185, %v2153, %v2217
    %v2250 = vsel %vm2186, %v2154, %v2218
    %v2251 = vsel %vm2187, %v2155, %v2219
    %v2252 = vsel %vm2188, %v2156, %v2220
    %v2253 = vsel %vm2189, %v2157, %v2221
    %v2254 = vsel %vm2190, %v2158, %v2222
    %v2255 = vsel %vm2191, %v2159, %v2223
    %v2257 = vlaneseq
    %v2258 = vshrl.u32 %v2257, 7
    %v2259 = vsub.s32 0, %v2258
    %v2260 = vrot.slane %v1827, %v2259
    %v2262 = vmul.f32 %v2224, %v2260
    %v2263 = vmul.f32 %v2225, %v2260
    %v2264 = vmul.f32 %v2226, %v2260
    %v2265 = vmul.f32 %v2227, %v2260
    %v2266 = vmul.f32 %v2228, %v2260
    %v2267 = vmul.f32 %v2229, %v2260
    %v2268 = vmul.f32 %v2230, %v2260
    %v2269 = vmul.f32 %v2231, %v2260
    %v2270 = vmul.f32 %v2232, %v2260
    %v2271 = vmul.f32 %v2233, %v2260
    %v2272 = vmul.f32 %v2234, %v2260
    %v2273 = vmul.f32 %v2235, %v2260
    %v2274 = vmul.f32 %v2236, %v2260
    %v2275 = vmul.f32 %v2237, %v2260
    %v2276 = vmul.f32 %v2238, %v2260
    %v2277 = vmul.f32 %v2239, %v2260
    %v2278 = vmul.f32 %v2240, %v2260
    %v2279 = vmul.f32 %v2241, %v2260
    %v2280 = vmul.f32 %v2242, %v2260
    %v2281 = vmul.f32 %v2243, %v2260
    %v2282 = vmul.f32 %v2244, %v2260
    %v2283 = vmul.f32 %v2245, %v2260
    %v2284 = vmul.f32 %v2246, %v2260
    %v2285 = vmul.f32 %v2247, %v2260
    %v2286 = vmul.f32 %v2248, %v2260
    %v2287 = vmul.f32 %v2249, %v2260
    %v2288 = vmul.f32 %v2250, %v2260
    %v2289 = vmul.f32 %v2251, %v2260
    %v2290 = vmul.f32 %v2252, %v2260
    %v2291 = vmul.f32 %v2253, %v2260
    %v2292 = vmul.f32 %v2254, %v2260
    %v2293 = vmul.f32 %v2255, %v2260
    %v2294 = vsel %vm65, %v2262, 0.0
    %2295 = vadd.xlane.f32.xlu0 %v2294
    %v2296 = vpop.xlane.xlu0 %2295
    %v2297 = vsel %vm65, %v2263, 0.0
    %2298 = vadd.xlane.f32.xlu0 %v2297
    %v2299 = vpop.xlane.xlu0 %2298
    %v2300 = vsel %vm65, %v2264, 0.0
    %2301 = vadd.xlane.f32.xlu0 %v2300
    %v2302 = vpop.xlane.xlu0 %2301
    %v2303 = vsel %vm65, %v2265, 0.0
    %2304 = vadd.xlane.f32.xlu0 %v2303
    %v2305 = vpop.xlane.xlu0 %2304
    %v2306 = vsel %vm65, %v2266, 0.0
    %2307 = vadd.xlane.f32.xlu0 %v2306
    %v2308 = vpop.xlane.xlu0 %2307
    %v2309 = vsel %vm65, %v2267, 0.0
    %2310 = vadd.xlane.f32.xlu0 %v2309
    %v2311 = vpop.xlane.xlu0 %2310
    %v2312 = vsel %vm65, %v2268, 0.0
    %2313 = vadd.xlane.f32.xlu0 %v2312
    %v2314 = vpop.xlane.xlu0 %2313
    %v2315 = vsel %vm65, %v2269, 0.0
    %2316 = vadd.xlane.f32.xlu0 %v2315
    %v2317 = vpop.xlane.xlu0 %2316
    %v2318 = vsel %vm65, %v2270, 0.0
    %2319 = vadd.xlane.f32.xlu0 %v2318
    %v2320 = vpop.xlane.xlu0 %2319
    %v2321 = vsel %vm65, %v2271, 0.0
    %2322 = vadd.xlane.f32.xlu0 %v2321
    %v2323 = vpop.xlane.xlu0 %2322
    %v2324 = vsel %vm65, %v2272, 0.0
    %2325 = vadd.xlane.f32.xlu0 %v2324
    %v2326 = vpop.xlane.xlu0 %2325
    %v2327 = vsel %vm65, %v2273, 0.0
    %2328 = vadd.xlane.f32.xlu0 %v2327
    %v2329 = vpop.xlane.xlu0 %2328
    %v2330 = vsel %vm65, %v2274, 0.0
    %2331 = vadd.xlane.f32.xlu0 %v2330
    %v2332 = vpop.xlane.xlu0 %2331
    %v2333 = vsel %vm65, %v2275, 0.0
    %2334 = vadd.xlane.f32.xlu0 %v2333
    %v2335 = vpop.xlane.xlu0 %2334
    %v2336 = vsel %vm65, %v2276, 0.0
    %2337 = vadd.xlane.f32.xlu0 %v2336
    %v2338 = vpop.xlane.xlu0 %2337
    %v2339 = vsel %vm65, %v2277, 0.0
    %2340 = vadd.xlane.f32.xlu0 %v2339
    %v2341 = vpop.xlane.xlu0 %2340
    %v2342 = vsel %vm65, %v2278, 0.0
    %2343 = vadd.xlane.f32.xlu0 %v2342
    %v2344 = vpop.xlane.xlu0 %2343
    %v2345 = vsel %vm65, %v2279, 0.0
    %2346 = vadd.xlane.f32.xlu0 %v2345
    %v2347 = vpop.xlane.xlu0 %2346
    %v2348 = vsel %vm65, %v2280, 0.0
    %2349 = vadd.xlane.f32.xlu0 %v2348
    %v2350 = vpop.xlane.xlu0 %2349
    %v2351 = vsel %vm65, %v2281, 0.0
    %2352 = vadd.xlane.f32.xlu0 %v2351
    %v2353 = vpop.xlane.xlu0 %2352
    %v2354 = vsel %vm65, %v2282, 0.0
    %2355 = vadd.xlane.f32.xlu0 %v2354
    %v2356 = vpop.xlane.xlu0 %2355
    %v2357 = vsel %vm65, %v2283, 0.0
    %2358 = vadd.xlane.f32.xlu0 %v2357
    %v2359 = vpop.xlane.xlu0 %2358
    %v2360 = vsel %vm65, %v2284, 0.0
    %2361 = vadd.xlane.f32.xlu0 %v2360
    %v2362 = vpop.xlane.xlu0 %2361
    %v2363 = vsel %vm65, %v2285, 0.0
    %2364 = vadd.xlane.f32.xlu0 %v2363
    %v2365 = vpop.xlane.xlu0 %2364
    %v2366 = vsel %vm65, %v2286, 0.0
    %2367 = vadd.xlane.f32.xlu0 %v2366
    %v2368 = vpop.xlane.xlu0 %2367
    %v2369 = vsel %vm65, %v2287, 0.0
    %2370 = vadd.xlane.f32.xlu0 %v2369
    %v2371 = vpop.xlane.xlu0 %2370
    %v2372 = vsel %vm65, %v2288, 0.0
    %2373 = vadd.xlane.f32.xlu0 %v2372
    %v2374 = vpop.xlane.xlu0 %2373
    %v2375 = vsel %vm65, %v2289, 0.0
    %2376 = vadd.xlane.f32.xlu0 %v2375
    %v2377 = vpop.xlane.xlu0 %2376
    %v2378 = vsel %vm65, %v2290, 0.0
    %2379 = vadd.xlane.f32.xlu0 %v2378
    %v2380 = vpop.xlane.xlu0 %2379
    %v2381 = vsel %vm65, %v2291, 0.0
    %2382 = vadd.xlane.f32.xlu0 %v2381
    %v2383 = vpop.xlane.xlu0 %2382
    %v2384 = vsel %vm65, %v2292, 0.0
    %2385 = vadd.xlane.f32.xlu0 %v2384
    %v2386 = vpop.xlane.xlu0 %2385
    %v2387 = vsel %vm65, %v2293, 0.0
    %2388 = vadd.xlane.f32.xlu0 %v2387
    %v2389 = vpop.xlane.xlu0 %2388
    %v2422 = vlaneseq
    %v2423 = vshrl.u32 %v2422, 7
    %v2424 = vsub.s32 %v657, %v2423
    %v2425 = vrot.slane %v2296, %v2424
    %v2426 = vlaneseq
    %v2427 = vshrl.u32 %v2426, 7
    %v2428 = vsub.s32 %v662, %v2427
    %v2429 = vrot.slane %v2299, %v2428
    %v2430 = vsel %vm667, %v2429, %v2425
    %v2431 = vlaneseq
    %v2432 = vshrl.u32 %v2431, 7
    %v2433 = vsub.s32 %v657, %v2432
    %v2434 = vrot.slane %v2302, %v2433
    %v2435 = vlaneseq
    %v2436 = vshrl.u32 %v2435, 7
    %v2437 = vsub.s32 %v662, %v2436
    %v2438 = vrot.slane %v2305, %v2437
    %v2439 = vsel %vm667, %v2438, %v2434
    %v2440 = vlaneseq
    %v2441 = vshrl.u32 %v2440, 7
    %v2442 = vsub.s32 %v657, %v2441
    %v2443 = vrot.slane %v2308, %v2442
    %v2444 = vlaneseq
    %v2445 = vshrl.u32 %v2444, 7
    %v2446 = vsub.s32 %v662, %v2445
    %v2447 = vrot.slane %v2311, %v2446
    %v2448 = vsel %vm667, %v2447, %v2443
    %v2449 = vlaneseq
    %v2450 = vshrl.u32 %v2449, 7
    %v2451 = vsub.s32 %v657, %v2450
    %v2452 = vrot.slane %v2314, %v2451
    %v2453 = vlaneseq
    %v2454 = vshrl.u32 %v2453, 7
    %v2455 = vsub.s32 %v662, %v2454
    %v2456 = vrot.slane %v2317, %v2455
    %v2457 = vsel %vm667, %v2456, %v2452
    %v2458 = vlaneseq
    %v2459 = vshrl.u32 %v2458, 7
    %v2460 = vsub.s32 %v657, %v2459
    %v2461 = vrot.slane %v2320, %v2460
    %v2462 = vlaneseq
    %v2463 = vshrl.u32 %v2462, 7
    %v2464 = vsub.s32 %v662, %v2463
    %v2465 = vrot.slane %v2323, %v2464
    %v2466 = vsel %vm667, %v2465, %v2461
    %v2467 = vlaneseq
    %v2468 = vshrl.u32 %v2467, 7
    %v2469 = vsub.s32 %v657, %v2468
    %v2470 = vrot.slane %v2326, %v2469
    %v2471 = vlaneseq
    %v2472 = vshrl.u32 %v2471, 7
    %v2473 = vsub.s32 %v662, %v2472
    %v2474 = vrot.slane %v2329, %v2473
    %v2475 = vsel %vm667, %v2474, %v2470
    %v2476 = vlaneseq
    %v2477 = vshrl.u32 %v2476, 7
    %v2478 = vsub.s32 %v657, %v2477
    %v2479 = vrot.slane %v2332, %v2478
    %v2480 = vlaneseq
    %v2481 = vshrl.u32 %v2480, 7
    %v2482 = vsub.s32 %v662, %v2481
    %v2483 = vrot.slane %v2335, %v2482
    %v2484 = vsel %vm667, %v2483, %v2479
    %v2485 = vlaneseq
    %v2486 = vshrl.u32 %v2485, 7
    %v2487 = vsub.s32 %v657, %v2486
    %v2488 = vrot.slane %v2338, %v2487
    %v2489 = vlaneseq
    %v2490 = vshrl.u32 %v2489, 7
    %v2491 = vsub.s32 %v662, %v2490
    %v2492 = vrot.slane %v2341, %v2491
    %v2493 = vsel %vm667, %v2492, %v2488
    %v2494 = vlaneseq
    %v2495 = vshrl.u32 %v2494, 7
    %v2496 = vsub.s32 %v657, %v2495
    %v2497 = vrot.slane %v2344, %v2496
    %v2498 = vlaneseq
    %v2499 = vshrl.u32 %v2498, 7
    %v2500 = vsub.s32 %v662, %v2499
    %v2501 = vrot.slane %v2347, %v2500
    %v2502 = vsel %vm667, %v2501, %v2497
    %v2503 = vlaneseq
    %v2504 = vshrl.u32 %v2503, 7
    %v2505 = vsub.s32 %v657, %v2504
    %v2506 = vrot.slane %v2350, %v2505
    %v2507 = vlaneseq
    %v2508 = vshrl.u32 %v2507, 7
    %v2509 = vsub.s32 %v662, %v2508
    %v2510 = vrot.slane %v2353, %v2509
    %v2511 = vsel %vm667, %v2510, %v2506
    %v2512 = vlaneseq
    %v2513 = vshrl.u32 %v2512, 7
    %v2514 = vsub.s32 %v657, %v2513
    %v2515 = vrot.slane %v2356, %v2514
    %v2516 = vlaneseq
    %v2517 = vshrl.u32 %v2516, 7
    %v2518 = vsub.s32 %v662, %v2517
    %v2519 = vrot.slane %v2359, %v2518
    %v2520 = vsel %vm667, %v2519, %v2515
    %v2521 = vlaneseq
    %v2522 = vshrl.u32 %v2521, 7
    %v2523 = vsub.s32 %v657, %v2522
    %v2524 = vrot.slane %v2362, %v2523
    %v2525 = vlaneseq
    %v2526 = vshrl.u32 %v2525, 7
    %v2527 = vsub.s32 %v662, %v2526
    %v2528 = vrot.slane %v2365, %v2527
    %v2529 = vsel %vm667, %v2528, %v2524
    %v2530 = vlaneseq
    %v2531 = vshrl.u32 %v2530, 7
    %v2532 = vsub.s32 %v657, %v2531
    %v2533 = vrot.slane %v2368, %v2532
    %v2534 = vlaneseq
    %v2535 = vshrl.u32 %v2534, 7
    %v2536 = vsub.s32 %v662, %v2535
    %v2537 = vrot.slane %v2371, %v2536
    %v2538 = vsel %vm667, %v2537, %v2533
    %v2539 = vlaneseq
    %v2540 = vshrl.u32 %v2539, 7
    %v2541 = vsub.s32 %v657, %v2540
    %v2542 = vrot.slane %v2374, %v2541
    %v2543 = vlaneseq
    %v2544 = vshrl.u32 %v2543, 7
    %v2545 = vsub.s32 %v662, %v2544
    %v2546 = vrot.slane %v2377, %v2545
    %v2547 = vsel %vm667, %v2546, %v2542
    %v2548 = vlaneseq
    %v2549 = vshrl.u32 %v2548, 7
    %v2550 = vsub.s32 %v657, %v2549
    %v2551 = vrot.slane %v2380, %v2550
    %v2552 = vlaneseq
    %v2553 = vshrl.u32 %v2552, 7
    %v2554 = vsub.s32 %v662, %v2553
    %v2555 = vrot.slane %v2383, %v2554
    %v2556 = vsel %vm667, %v2555, %v2551
    %v2557 = vlaneseq
    %v2558 = vshrl.u32 %v2557, 7
    %v2559 = vsub.s32 %v657, %v2558
    %v2560 = vrot.slane %v2386, %v2559
    %v2561 = vlaneseq
    %v2562 = vshrl.u32 %v2561, 7
    %v2563 = vsub.s32 %v662, %v2562
    %v2564 = vrot.slane %v2389, %v2563
    %v2565 = vsel %vm667, %v2564, %v2560
    %v2566 = vsel %vm804, %v2439, %v2430
    %v2567 = vsel %vm806, %v2448, %v2566
    %v2568 = vsel %vm808, %v2457, %v2567
    %v2569 = vsel %vm810, %v2466, %v2568
    %v2570 = vsel %vm812, %v2475, %v2569
    %v2571 = vsel %vm814, %v2484, %v2570
    %v2572 = vsel %vm816, %v2493, %v2571
    %v2573 = vsel %vm804, %v2511, %v2502
    %v2574 = vsel %vm806, %v2520, %v2573
    %v2575 = vsel %vm808, %v2529, %v2574
    %v2576 = vsel %vm810, %v2538, %v2575
    %v2577 = vsel %vm812, %v2547, %v2576
    %v2578 = vsel %vm814, %v2556, %v2577
    %v2579 = vsel %vm816, %v2565, %v2578
    %v2582 = vsel %vm622, %v2572, -1e+30
    %v2583 = vsel %vm623, %v2579, -1e+30
    %v2584 = vsel %vm829, %v2582, -inf
    %2585 = vmax.xlane.f32.xlu0 %v2584
    %v2586 = vpop.xlane.xlu0 %2585
    %v2587 = vsel %vm829, %v2583, -inf
    %2588 = vmax.xlane.f32.xlu0 %v2587
    %v2589 = vpop.xlane.xlu0 %2588
    %v2590 = vsub.f32 %v2582, %v2586
    %v2591 = vsub.f32 %v2583, %v2589
    %v2592 = vmul.f32 %v2590, 1.442695
    %v2593 = vpow.pop %v2592
    %v2594 = vmul.f32 %v2591, 1.442695
    %v2595 = vpow.pop %v2594
    %v2596 = vsel %vm829, %v2593, 0.0
    %2597 = vadd.xlane.f32.xlu0 %v2596
    %v2598 = vpop.xlane.xlu0 %2597
    %v2599 = vsel %vm829, %v2595, 0.0
    %2600 = vadd.xlane.f32.xlu0 %v2599
    %v2601 = vpop.xlane.xlu0 %2600
    %v2602 = vmax.f32 %v2598, 1e-30
    %v2603 = vmax.f32 %v2601, 1e-30
    %v2605 = vsel %vm829, %v2593, 0
    %v2608 = vsel %vm829, %v2595, 0
    %2610 = vmatprep.subr.mxu0 0.0
    %2611 = vmatpush1.msra.mxu0 %v1908
    %2612 = vmatprep.subr.mxu0 0.0
    %2613 = vmatpush1.msra.mxu0 %v1913
    %2614 = vmatprep.subr.mxu0 0.0
    %2615 = vmatpush1.msra.mxu0 0.0
    %2616 = vmatprep.subr.mxu0 0.0
    %2617 = vmatpush1.msra.mxu0 0.0
    %2618 = vmatprep.subr.mxu0 0.0
    %2619 = vmatpush1.msra.mxu0 0.0
    %2620 = vmatprep.subr.mxu0 0.0
    %2621 = vmatpush1.msra.mxu0 0.0
    %2622 = vmatprep.subr.mxu0 0.0
    %2623 = vmatpush1.msra.mxu0 0.0
    %2624 = vmatprep.subr.mxu0 0.0
    %2625 = vmatpush1.msra.mxu0 0.0
    %2626 = vmatprep.subr.mxu0 0.0
    %2627 = vmatpush1.msra.mxu0 0.0
    %2628 = vmatprep.subr.mxu0 0.0
    %2629 = vmatpush1.msra.mxu0 0.0
    %2630 = vmatprep.subr.mxu0 0.0
    %2631 = vmatpush1.msra.mxu0 0.0
    %2632 = vmatprep.subr.mxu0 0.0
    %2633 = vmatpush1.msra.mxu0 0.0
    %2634 = vmatprep.subr.mxu0 0.0
    %2635 = vmatpush1.msra.mxu0 0.0
    %2636 = vmatprep.subr.mxu0 0.0
    %2637 = vmatpush1.msra.mxu0 0.0
    %2638 = vmatprep.subr.mxu0 0.0
    %2639 = vmatpush1.msra.mxu0 0.0
    %2640 = vmatprep.subr.mxu0 0.0
    %2641 = vmatpush1.msra.mxu0 0.0
    %2642 = vmatprep.subr.mxu0 0.0
    %2643 = vmatpush1.msra.mxu0 0.0
    %2644 = vmatprep.subr.mxu0 0.0
    %2645 = vmatpush1.msra.mxu0 0.0
    %2646 = vmatprep.subr.mxu0 0.0
    %2647 = vmatpush1.msra.mxu0 0.0
    %2648 = vmatprep.subr.mxu0 0.0
    %2649 = vmatpush1.msra.mxu0 0.0
    %2650 = vmatprep.subr.mxu0 0.0
    %2651 = vmatpush1.msra.mxu0 0.0
    %2652 = vmatprep.subr.mxu0 0.0
    %2653 = vmatpush1.msra.mxu0 0.0
    %2654 = vmatprep.subr.mxu0 0.0
    %2655 = vmatpush1.msra.mxu0 0.0
    %2656 = vmatprep.subr.mxu0 0.0
    %2657 = vmatpush1.msra.mxu0 0.0
    %2658 = vmatprep.subr.mxu0 0.0
    %2659 = vmatpush1.msra.mxu0 0.0
    %2660 = vmatprep.subr.mxu0 0.0
    %2661 = vmatpush1.msra.mxu0 0.0
    %2662 = vmatprep.subr.mxu0 0.0
    %2663 = vmatpush1.msra.mxu0 0.0
    %2664 = vmatprep.subr.mxu0 0.0
    %2665 = vmatpush1.msra.mxu0 0.0
    %2666 = vmatprep.subr.mxu0 0.0
    %2667 = vmatpush1.msra.mxu0 0.0
    %2668 = vmatprep.subr.mxu0 0.0
    %2669 = vmatpush1.msra.mxu0 0.0
    %2670 = vmatprep.subr.mxu0 0.0
    %2671 = vmatpush1.msra.mxu0 0.0
    %2672 = vmatprep.subr.mxu0 0.0
    %2673 = vmatpush1.msra.mxu0 0.0
    %2674 = vmatprep.mubr.f32.mxu0 0.0
    %2675 = vmatmul.mubr.f32.gmra.mrb[0].mxu0 %v2605
    %v2676 = vpop.f32.mrb[0].mxu0
    %v2677 = vadd.f32 0.0, %v2676
    %v2678 = vpop.f32.mrb[0].mxu0
    %2679 = vmatprep.mubr.f32.mxu0 0.0
    %2680 = vmatmul.mubr.f32.gmra.mrb[0].mxu0 %v2608
    %v2681 = vpop.f32.mrb[0].mxu0
    %v2682 = vadd.f32 0.0, %v2681
    %v2683 = vpop.f32.mrb[0].mxu0
    %2684 = vdwg.mxu0
    %v2685 = vrcp.pop %v2602
    %v2686 = vrcp.pop %v2603
    %v2687 = vmul.f32 %v2677, %v2685
    %v2688 = vmul.f32 %v2682, %v2686
    %v2690 = vlaneseq
    %v2691 = vshrl.u32 %v2690, 7
    %v2692 = vsub.s32 0, %v2691
    %v2693 = vrot.slane %v1828, %v2692
    %v2695 = vadd.f32 %v2687, %v2693
    %v2696 = vadd.f32 %v2688, %v2693
    %v2697 = vld [vmem:[%s2] sm:$0x3]
    %v2699 = vsel %vm829, %v2697, 0
    %2701 = vmatprep.subr.mxu0 0.0
    %2702 = vmatpush1.msra.mxu0 %v2695
    %2703 = vmatprep.subr.mxu0 0.0
    %2704 = vmatpush1.msra.mxu0 %v2696
    %2705 = vmatprep.subr.mxu0 0.0
    %2706 = vmatpush1.msra.mxu0 0.0
    %2707 = vmatprep.subr.mxu0 0.0
    %2708 = vmatpush1.msra.mxu0 0.0
    %2709 = vmatprep.subr.mxu0 0.0
    %2710 = vmatpush1.msra.mxu0 0.0
    %2711 = vmatprep.subr.mxu0 0.0
    %2712 = vmatpush1.msra.mxu0 0.0
    %2713 = vmatprep.subr.mxu0 0.0
    %2714 = vmatpush1.msra.mxu0 0.0
    %2715 = vmatprep.subr.mxu0 0.0
    %2716 = vmatpush1.msra.mxu0 0.0
    %2717 = vmatprep.subr.mxu0 0.0
    %2718 = vmatpush1.msra.mxu0 0.0
    %2719 = vmatprep.subr.mxu0 0.0
    %2720 = vmatpush1.msra.mxu0 0.0
    %2721 = vmatprep.subr.mxu0 0.0
    %2722 = vmatpush1.msra.mxu0 0.0
    %2723 = vmatprep.subr.mxu0 0.0
    %2724 = vmatpush1.msra.mxu0 0.0
    %2725 = vmatprep.subr.mxu0 0.0
    %2726 = vmatpush1.msra.mxu0 0.0
    %2727 = vmatprep.subr.mxu0 0.0
    %2728 = vmatpush1.msra.mxu0 0.0
    %2729 = vmatprep.subr.mxu0 0.0
    %2730 = vmatpush1.msra.mxu0 0.0
    %2731 = vmatprep.subr.mxu0 0.0
    %2732 = vmatpush1.msra.mxu0 0.0
    %2733 = vmatprep.subr.mxu0 0.0
    %2734 = vmatpush1.msra.mxu0 0.0
    %2735 = vmatprep.subr.mxu0 0.0
    %2736 = vmatpush1.msra.mxu0 0.0
    %2737 = vmatprep.subr.mxu0 0.0
    %2738 = vmatpush1.msra.mxu0 0.0
    %2739 = vmatprep.subr.mxu0 0.0
    %2740 = vmatpush1.msra.mxu0 0.0
    %2741 = vmatprep.subr.mxu0 0.0
    %2742 = vmatpush1.msra.mxu0 0.0
    %2743 = vmatprep.subr.mxu0 0.0
    %2744 = vmatpush1.msra.mxu0 0.0
    %2745 = vmatprep.subr.mxu0 0.0
    %2746 = vmatpush1.msra.mxu0 0.0
    %2747 = vmatprep.subr.mxu0 0.0
    %2748 = vmatpush1.msra.mxu0 0.0
    %2749 = vmatprep.subr.mxu0 0.0
    %2750 = vmatpush1.msra.mxu0 0.0
    %2751 = vmatprep.subr.mxu0 0.0
    %2752 = vmatpush1.msra.mxu0 0.0
    %2753 = vmatprep.subr.mxu0 0.0
    %2754 = vmatpush1.msra.mxu0 0.0
    %2755 = vmatprep.subr.mxu0 0.0
    %2756 = vmatpush1.msra.mxu0 0.0
    %2757 = vmatprep.subr.mxu0 0.0
    %2758 = vmatpush1.msra.mxu0 0.0
    %2759 = vmatprep.subr.mxu0 0.0
    %2760 = vmatpush1.msra.mxu0 0.0
    %2761 = vmatprep.subr.mxu0 0.0
    %2762 = vmatpush1.msra.mxu0 0.0
    %2763 = vmatprep.subr.mxu0 0.0
    %2764 = vmatpush1.msra.mxu0 0.0
    %2765 = vmatprep.mubr.f32.mxu0 0.0
    %2766 = vmatmul.mubr.f32.gmra.mrb[0].mxu0 %v2699
    %v2767 = vpop.f32.mrb[0].mxu0
    %v2768 = vadd.f32 0.0, %v2767
    %v2769 = vpop.f32.mrb[0].mxu0
    %2770 = vdwg.mxu0
    %vm2771 = vcmask 58368
    %2772 = vst.msk [vmem:[#allocation2] sm:$0x3] %vm2771, %v2768
    // Predicated region
    $region62: #{tpu_custom_call.1} parent=1 // pred_check
      _
    $region63: #{tpu_custom_call.1} parent=1 // pred_check_branch
      %2774 = sbr.rel (0) target = $region65
    $region64: #{tpu_custom_call.1} parent=1 // pred_region
      %s2776 = ssub.s32 32, 32
      %2777 = vsyncadd [#allocation3], %s2776
      %s2779 = sshll.u32 [#allocation2], 4
      %s2780 = int_to_ptr.vmem [resolvable:$true] %s2779
      %2782 = dma.vmem_to_hbm [thread:$0]  %s2780, 32, %s15, [#allocation3]
    $region65: #{tpu_custom_call.1} parent=1 // pred_fallthru
      _
    // Predicated region
    $region66: #{tpu_custom_call.1} parent=1 // pred_check
      _
    $region67: #{tpu_custom_call.1} parent=1 // pred_check_branch
      %2784 = sbr.rel (0) target = $region69
    $region68: #{tpu_custom_call.1} parent=1 // pred_region
      %2785 = dma.done [#allocation3], 32
    $region69: #{tpu_custom_call.1} parent=1 // pred_fallthru
      _
    %2786 = vsyncpa [#allocation3], 1

</llo_original>
